<compile_context>
chip_gen: v5e
topology: v5e:2x2
jax: 0.10.0
libtpu: 0.0.40
codegen_flags: <defaults>
</compile_context>

<pallas_src>
from functools import partial

import jax
import jax.numpy as jnp
from jax.experimental import pallas as pl
from jax.experimental.pallas import tpu as pltpu

EPS = 1e-5  # PyTorch GroupNorm default eps


def _shift_time(x, s, t_row):
    """out[..., t] = x[..., t + s], zero where t + s falls outside [0, T)."""
    T = x.shape[-1]
    if s == 0:
        return x
    # pltpu.roll has jnp.roll semantics: rolled[t] = x[(t - shift) % T],
    # so shift = (-s) % T gives rolled[t] = x[(t + s) % T]; mask the wrap.
    rolled = pltpu.roll(x, shift=(-s) % T, axis=x.ndim - 1)
    if s > 0:
        mask = t_row < (T - s)
    else:
        mask = t_row >= (-s)
    return jnp.where(mask, rolled, 0.0)


# --------------------------------------------------------------------------
# Pallas kernel: one sample per grid step, all `depth` layers fused in-kernel.
# Parameter refs hold the full depth-stacked arrays (VMEM-resident).
# --------------------------------------------------------------------------
def _conv_module_kernel(K, depth, x_ref, gn1_w_ref, gn1_b_ref, w1_ref, b1_ref,
                        wd_ref, bd_ref, gn2_w_ref, gn2_b_ref, wp_ref, bp_ref,
                        o_ref, slab_ref):
    pad = K // 2
    C, T = o_ref.shape[1], o_ref.shape[2]
    inv_nc = 1.0 / (C * T)
    t_row = jax.lax.broadcasted_iota(jnp.int32, (1, T), 1)  # hoisted edge mask iota

    def layer(d, cur):
        # --- GroupNorm(1, C): fused one-pass stats over the (C, T) sample ----
        m1 = jnp.sum(cur) * inv_nc
        q1 = jnp.sum(cur * cur) * inv_nc
        v1 = q1 - m1 * m1
        xn = (cur - m1) * jax.lax.rsqrt(v1 + EPS)
        xn = xn * gn1_w_ref[d] + gn1_b_ref[d]              # (C, 1) affine

        # --- Conv1d(C -> 2H, kernel K, pad K//2): ONE im2col matmul ----------
        # slab row (k*C + c, t) = xn[c, t + k - pad]; w1_ref[d] was pre-reshaped
        # to (2H, K*C) with matching ordering.  Shifted pieces are written
        # straight into the VMEM scratch at static row offsets (no concatenate).
        for k in range(K):
            slab_ref[k * C:(k + 1) * C, :] = _shift_time(xn, k - pad, t_row)
        y = jnp.dot(w1_ref[d], slab_ref[...],
                    preferred_element_type=jnp.float32) + b1_ref[d]   # (2H, T)

        # --- GLU along channels ----------------------------------------------
        H = y.shape[0] // 2
        h = y[:H] * jax.nn.sigmoid(y[H:])                   # (H, T)

        # --- depthwise Conv1d(H -> H, kernel K, groups=H): VPU FMA taps -------
        wd = wd_ref[d]                                      # (H, K)
        hacc = wd[:, pad:pad + 1] * h                       # center tap, no shift
        for k in range(K):
            if k == pad:
                continue
            hacc = hacc + wd[:, k:k + 1] * _shift_time(h, k - pad, t_row)
        h = hacc + bd_ref[d]                                # (H, T)

        # --- GroupNorm(1, H) + Swish: fused one-pass stats --------------------
        inv_nh = 1.0 / (H * T)
        m2 = jnp.sum(h) * inv_nh
        q2 = jnp.sum(h * h) * inv_nh
        v2 = q2 - m2 * m2
        hn = (h - m2) * jax.lax.rsqrt(v2 + EPS)
        hn = hn * gn2_w_ref[d] + gn2_b_ref[d]
        hn = hn * jax.nn.sigmoid(hn)

        # --- pointwise Conv1d(H -> C) + residual -------------------------------
        out = jnp.dot(wp_ref[d], hn,
                      preferred_element_type=jnp.float32) + bp_ref[d]
        return cur + out

    cur0 = x_ref[0].astype(jnp.float32)                     # (C, T) residual stream
    res = jax.lax.fori_loop(0, depth, layer, cur0, unroll=True)
    o_ref[0] = res.astype(o_ref.dtype)


def conv_module_forward(x, params, kernel):
    """Fused forward of the whole ConvolutionModule. x: (B, C, T) f32."""
    B, C, T = x.shape
    depth = len(params)
    K = kernel
    assert K % 2 == 1, "ConvolutionModule requires an odd kernel size"
    two_h = params[0]["w1"].shape[0]

    stack = lambda name: jnp.stack([p[name] for p in params], axis=0)
    # Reorder Conv1d weights for the im2col matmul: (depth, 2H, K*C), j = k*C + c.
    w1r = jnp.stack([p["w1"].transpose(0, 2, 1).reshape(two_h, K * C)
                     for p in params], axis=0)

    args = (x,
            stack("gn1_w"), stack("gn1_b"), w1r, stack("b1"),
            stack("wd"), stack("bd"), stack("gn2_w"), stack("gn2_b"),
            stack("wp"), stack("bp"))

    def resident(a):
        # Whole depth-stacked array as one block with a constant index_map:
        # DMA'd once before the first grid step and kept VMEM-resident.
        nd = a.ndim
        return pl.BlockSpec(a.shape, lambda b, _nd=nd: (0,) * _nd)

    in_specs = [pl.BlockSpec((1, C, T), lambda b: (b, 0, 0))] + \
               [resident(a) for a in args[1:]]

    return pl.pallas_call(
        partial(_conv_module_kernel, K, depth),
        out_shape=jax.ShapeDtypeStruct((B, C, T), x.dtype),
        grid=(B,),
        in_specs=in_specs,
        out_specs=pl.BlockSpec((1, C, T), lambda b: (b, 0, 0)),
        scratch_shapes=[pltpu.VMEM((K * C, T), jnp.float32)],   # im2col slab
        compiler_params=pltpu.CompilerParams(
            dimension_semantics=("parallel",)),
    )(*args)


# --------------------------------------------------------------------------
# Pure-JAX reference (for correctness check)
# --------------------------------------------------------------------------
def ref_layer(x, p, K):
    pad = K // 2
    mean = x.mean(axis=(1, 2), keepdims=True)
    var = ((x - mean) ** 2).mean(axis=(1, 2), keepdims=True)
    xn = (x - mean) / jnp.sqrt(var + EPS) * p["gn1_w"][None] + p["gn1_b"][None]
    y = jax.lax.conv_general_dilated(
        xn, p["w1"], (1,), [(pad, pad)],
        dimension_numbers=("NCH", "OIH", "NCH")) + p["b1"][None]
    H = y.shape[1] // 2
    h = y[:, :H] * jax.nn.sigmoid(y[:, H:])
    h = jax.lax.conv_general_dilated(
        h, p["wd"][:, None, :], (1,), [(pad, pad)],
        dimension_numbers=("NCH", "OIH", "NCH"),
        feature_group_count=H) + p["bd"][None]
    m2 = h.mean(axis=(1, 2), keepdims=True)
    v2 = ((h - m2) ** 2).mean(axis=(1, 2), keepdims=True)
    hn = (h - m2) / jnp.sqrt(v2 + EPS) * p["gn2_w"][None] + p["gn2_b"][None]
    hn = hn * jax.nn.sigmoid(hn)
    out = jnp.einsum("ch,bht->bct", p["wp"], hn) + p["bp"][None]
    return x + out


# --------------------------------------------------------------------------
# Deterministic synthetic parameter init (same shapes as the PyTorch module)
# --------------------------------------------------------------------------
def init_params(key, channels, hidden, kernel, depth):
    params = []
    for d in range(depth):
        ks = jax.random.split(jax.random.fold_in(key, d), 10)
        p = {
            "gn1_w": 1.0 + 0.1 * jax.random.normal(ks[0], (channels, 1), jnp.float32),
            "gn1_b": 0.1 * jax.random.normal(ks[1], (channels, 1), jnp.float32),
            "w1":    0.1 * jax.random.normal(ks[2], (2 * hidden, channels, kernel), jnp.float32),
            "b1":    0.1 * jax.random.normal(ks[3], (2 * hidden, 1), jnp.float32),
            "wd":    0.1 * jax.random.normal(ks[4], (hidden, kernel), jnp.float32),
            "bd":    0.1 * jax.random.normal(ks[5], (hidden, 1), jnp.float32),
            "gn2_w": 1.0 + 0.1 * jax.random.normal(ks[6], (hidden, 1), jnp.float32),
            "gn2_b": 0.1 * jax.random.normal(ks[7], (hidden, 1), jnp.float32),
            "wp":    0.1 * jax.random.normal(ks[8], (channels, hidden), jnp.float32),
            "bp":    0.1 * jax.random.normal(ks[9], (channels, 1), jnp.float32),
        }
        params.append(p)
    return params


if __name__ == "__main__":
    # T = 256 keeps every dot's lane (minor) axis 256-wide: fills the 256-wide
    # MXU on v6e/v7x and is a multiple of 128 for v5e.
    B, C, T = 2, 32, 256           # batch, channels, time
    compress, kernel, depth = 4, 3, 2
    H = C // compress              # hidden_size = channels / compress

    key = jax.random.PRNGKey(0)
    xkey, pkey = jax.random.split(key)
    x = jax.random.normal(xkey, (B, C, T), jnp.float32)
    params = init_params(pkey, C, H, kernel, depth)

    fwd = jax.jit(lambda xx, pp: conv_module_forward(xx, pp, kernel))
    y = jax.block_until_ready(fwd(x, params))

    y_ref = x
    for p in params:
        y_ref = ref_layer(y_ref, p, kernel)

    assert y.shape == (B, C, T)
    assert jnp.allclose(y, y_ref, atol=2e-3, rtol=2e-3), \
        float(jnp.max(jnp.abs(y - y_ref)))
    print("KERNEL_OK")
</pallas_src>

<mosaic_0001>
module attributes {stable_mosaic.version = 11 : i64} {
  func.func @_conv_module_kernel(%arg0: i32, %arg1: memref<1x32x256xf32, #tpu.memory_space<vmem>>, %arg2: memref<2x32x1xf32, #tpu.memory_space<vmem>>, %arg3: memref<2x32x1xf32, #tpu.memory_space<vmem>>, %arg4: memref<2x16x96xf32, #tpu.memory_space<vmem>>, %arg5: memref<2x16x1xf32, #tpu.memory_space<vmem>>, %arg6: memref<2x8x3xf32, #tpu.memory_space<vmem>>, %arg7: memref<2x8x1xf32, #tpu.memory_space<vmem>>, %arg8: memref<2x8x1xf32, #tpu.memory_space<vmem>>, %arg9: memref<2x8x1xf32, #tpu.memory_space<vmem>>, %arg10: memref<2x32x8xf32, #tpu.memory_space<vmem>>, %arg11: memref<2x32x1xf32, #tpu.memory_space<vmem>>, %arg12: memref<1x32x256xf32, #tpu.memory_space<vmem>>, %arg13: memref<96x256xf32, #tpu.memory_space<vmem>>) attributes {dimension_semantics = [#tpu.dimension_semantics<parallel>], iteration_bounds = array<i64: 2>, scalar_prefetch = 0 : i64, scratch_operands = 1 : i64, tpu.core_type = #tpu.core_type<tc>, window_params = [{transform_indices = @transform_0, window_bounds = array<i64: 1, 32, 256>}, {pipeline_mode = #tpu.pipeline_mode<synchronous>, transform_indices = @transform_1, window_bounds = array<i64: 2, 32, 1>}, {pipeline_mode = #tpu.pipeline_mode<synchronous>, transform_indices = @transform_2, window_bounds = array<i64: 2, 32, 1>}, {pipeline_mode = #tpu.pipeline_mode<synchronous>, transform_indices = @transform_3, window_bounds = array<i64: 2, 16, 96>}, {pipeline_mode = #tpu.pipeline_mode<synchronous>, transform_indices = @transform_4, window_bounds = array<i64: 2, 16, 1>}, {pipeline_mode = #tpu.pipeline_mode<synchronous>, transform_indices = @transform_5, window_bounds = array<i64: 2, 8, 3>}, {pipeline_mode = #tpu.pipeline_mode<synchronous>, transform_indices = @transform_6, window_bounds = array<i64: 2, 8, 1>}, {pipeline_mode = #tpu.pipeline_mode<synchronous>, transform_indices = @transform_7, window_bounds = array<i64: 2, 8, 1>}, {pipeline_mode = #tpu.pipeline_mode<synchronous>, transform_indices = @transform_8, window_bounds = array<i64: 2, 8, 1>}, {pipeline_mode = #tpu.pipeline_mode<synchronous>, transform_indices = @transform_9, window_bounds = array<i64: 2, 32, 8>}, {pipeline_mode = #tpu.pipeline_mode<synchronous>, transform_indices = @transform_10, window_bounds = array<i64: 2, 32, 1>}, {transform_indices = @transform_11, window_bounds = array<i64: 1, 32, 256>}]} {
    %0 = tpu.iota {dimensions = array<i32: 1>} : vector<1x256xi32>
    %c0 = arith.constant 0 : index
    %c0_0 = arith.constant 0 : index
    %c0_1 = arith.constant 0 : index
    %1 = vector.load %arg1[%c0, %c0_0, %c0_1] : memref<1x32x256xf32, #tpu.memory_space<vmem>>, vector<1x32x256xf32>
    %2 = vector.shape_cast %1 : vector<1x32x256xf32> to vector<32x256xf32>
    %c0_i32 = arith.constant 0 : i32
    %3 = vector.shape_cast %2 : vector<32x256xf32> to vector<1x32x256xf32>
    %cst = arith.constant dense<0.000000e+00> : vector<1xf32>
    %4 = vector.multi_reduction <add>, %3, %cst [1, 2] : vector<1x32x256xf32> to vector<1xf32>
    %5 = vector.shape_cast %4 : vector<1xf32> to vector<1x1x1xf32>
    %6 = vector.extract %5[0, 0, 0] : f32 from vector<1x1x1xf32>
    %cst_2 = arith.constant 1.22070313E-4 : f32
    %7 = arith.mulf %6, %cst_2 : f32
    %8 = arith.mulf %2, %2 : vector<32x256xf32>
    %9 = vector.shape_cast %8 : vector<32x256xf32> to vector<1x32x256xf32>
    %cst_3 = arith.constant dense<0.000000e+00> : vector<1xf32>
    %10 = vector.multi_reduction <add>, %9, %cst_3 [1, 2] : vector<1x32x256xf32> to vector<1xf32>
    %11 = vector.shape_cast %10 : vector<1xf32> to vector<1x1x1xf32>
    %12 = vector.extract %11[0, 0, 0] : f32 from vector<1x1x1xf32>
    %cst_4 = arith.constant 1.22070313E-4 : f32
    %13 = arith.mulf %12, %cst_4 : f32
    %14 = arith.mulf %7, %7 : f32
    %15 = arith.subf %13, %14 : f32
    %16 = vector.broadcast %7 : f32 to vector<32x256xf32>
    %17 = arith.subf %2, %16 : vector<32x256xf32>
    %cst_5 = arith.constant 9.99999974E-6 : f32
    %18 = arith.addf %15, %cst_5 : f32
    %19 = math.rsqrt %18 : f32
    %20 = vector.broadcast %19 : f32 to vector<32x256xf32>
    %21 = arith.mulf %17, %20 : vector<32x256xf32>
    %22 = arith.index_cast %c0_i32 : i32 to index
    %c0_6 = arith.constant 0 : index
    %c0_7 = arith.constant 0 : index
    %23 = vector.load %arg2[%22, %c0_6, %c0_7] : memref<2x32x1xf32, #tpu.memory_space<vmem>>, vector<1x32x1xf32>
    %24 = vector.shape_cast %23 : vector<1x32x1xf32> to vector<32x1xf32>
    %25 = vector.broadcast %24 : vector<32x1xf32> to vector<32x256xf32>
    %26 = arith.mulf %21, %25 : vector<32x256xf32>
    %27 = arith.index_cast %c0_i32 : i32 to index
    %c0_8 = arith.constant 0 : index
    %c0_9 = arith.constant 0 : index
    %28 = vector.load %arg3[%27, %c0_8, %c0_9] : memref<2x32x1xf32, #tpu.memory_space<vmem>>, vector<1x32x1xf32>
    %29 = vector.shape_cast %28 : vector<1x32x1xf32> to vector<32x1xf32>
    %30 = vector.broadcast %29 : vector<32x1xf32> to vector<32x256xf32>
    %31 = arith.addf %26, %30 : vector<32x256xf32>
    %c1_i32 = arith.constant 1 : i32
    %32 = tpu.dynamic_rotate %31 by %c1_i32 dim 1 : vector<32x256xf32>, i32 -> vector<32x256xf32>
    %c1_i32_10 = arith.constant 1 : i32
    %33 = vector.broadcast %c1_i32_10 : i32 to vector<1x256xi32>
    %34 = arith.cmpi sge, %0, %33 : vector<1x256xi32>
    %cst_11 = arith.constant 0.000000e+00 : f32
    %35 = vector.shape_cast %34 : vector<1x256xi1> to vector<1x256xi1>
    %36 = vector.broadcast %35 : vector<1x256xi1> to vector<32x256xi1>
    %37 = vector.broadcast %cst_11 : f32 to vector<32x256xf32>
    %38 = arith.select %36, %32, %37 : vector<32x256xi1>, vector<32x256xf32>
    %c0_12 = arith.constant 0 : index
    %c0_13 = arith.constant 0 : index
    %39 = vector.load %arg13[%c0_12, %c0_13] : memref<96x256xf32, #tpu.memory_space<vmem>>, vector<32x256xf32>
    tpu.vector_store %arg13[%c0_12, %c0_13], %38 {strides = array<i32>} : memref<96x256xf32, #tpu.memory_space<vmem>>, vector<32x256xf32>,
    %c32 = arith.constant 32 : index
    %c0_14 = arith.constant 0 : index
    %40 = vector.load %arg13[%c32, %c0_14] : memref<96x256xf32, #tpu.memory_space<vmem>>, vector<32x256xf32>
    tpu.vector_store %arg13[%c32, %c0_14], %31 {strides = array<i32>} : memref<96x256xf32, #tpu.memory_space<vmem>>, vector<32x256xf32>,
    %c255_i32 = arith.constant 255 : i32
    %41 = tpu.dynamic_rotate %31 by %c255_i32 dim 1 : vector<32x256xf32>, i32 -> vector<32x256xf32>
    %c255_i32_15 = arith.constant 255 : i32
    %42 = vector.broadcast %c255_i32_15 : i32 to vector<1x256xi32>
    %43 = arith.cmpi slt, %0, %42 : vector<1x256xi32>
    %cst_16 = arith.constant 0.000000e+00 : f32
    %44 = vector.shape_cast %43 : vector<1x256xi1> to vector<1x256xi1>
    %45 = vector.broadcast %44 : vector<1x256xi1> to vector<32x256xi1>
    %46 = vector.broadcast %cst_16 : f32 to vector<32x256xf32>
    %47 = arith.select %45, %41, %46 : vector<32x256xi1>, vector<32x256xf32>
    %c64 = arith.constant 64 : index
    %c0_17 = arith.constant 0 : index
    %48 = vector.load %arg13[%c64, %c0_17] : memref<96x256xf32, #tpu.memory_space<vmem>>, vector<32x256xf32>
    tpu.vector_store %arg13[%c64, %c0_17], %47 {strides = array<i32>} : memref<96x256xf32, #tpu.memory_space<vmem>>, vector<32x256xf32>,
    %49 = arith.index_cast %c0_i32 : i32 to index
    %c0_18 = arith.constant 0 : index
    %c0_19 = arith.constant 0 : index
    %50 = vector.load %arg4[%49, %c0_18, %c0_19] : memref<2x16x96xf32, #tpu.memory_space<vmem>>, vector<1x16x96xf32>
    %51 = vector.shape_cast %50 : vector<1x16x96xf32> to vector<16x96xf32>
    %c0_20 = arith.constant 0 : index
    %c0_21 = arith.constant 0 : index
    %52 = vector.load %arg13[%c0_20, %c0_21] : memref<96x256xf32, #tpu.memory_space<vmem>>, vector<96x256xf32>
    %cst_22 = arith.constant dense<0.000000e+00> : vector<16x256xf32>
    %53 = tpu.matmul %51, %52, %cst_22 {dimension_numbers = #tpu.dot_dimension_numbers<[1], [0], [0], [1], [0, 0, 1, 1], [], []>} : vector<16x96xf32>, vector<96x256xf32>, vector<16x256xf32> -> vector<16x256xf32>
    %54 = arith.index_cast %c0_i32 : i32 to index
    %c0_23 = arith.constant 0 : index
    %c0_24 = arith.constant 0 : index
    %55 = vector.load %arg5[%54, %c0_23, %c0_24] : memref<2x16x1xf32, #tpu.memory_space<vmem>>, vector<1x16x1xf32>
    %56 = vector.shape_cast %55 : vector<1x16x1xf32> to vector<16x1xf32>
    %57 = vector.broadcast %56 : vector<16x1xf32> to vector<16x256xf32>
    %58 = arith.addf %53, %57 : vector<16x256xf32>
    %59 = vector.extract_strided_slice %58 {offsets = [0, 0], sizes = [8, 256], strides = [1, 1]} : vector<16x256xf32> to vector<8x256xf32>
    %60 = vector.extract_strided_slice %58 {offsets = [8, 0], sizes = [8, 256], strides = [1, 1]} : vector<16x256xf32> to vector<8x256xf32>
    %61 = arith.negf %60 : vector<8x256xf32>
    %62 = math.exp %61 : vector<8x256xf32>
    %cst_25 = arith.constant 1.000000e+00 : f32
    %63 = vector.broadcast %cst_25 : f32 to vector<8x256xf32>
    %64 = arith.addf %63, %62 : vector<8x256xf32>
    %65 = arith.divf %63, %64 : vector<8x256xf32>
    %66 = arith.mulf %59, %65 : vector<8x256xf32>
    %67 = arith.index_cast %c0_i32 : i32 to index
    %c0_26 = arith.constant 0 : index
    %c0_27 = arith.constant 0 : index
    %68 = vector.load %arg6[%67, %c0_26, %c0_27] : memref<2x8x3xf32, #tpu.memory_space<vmem>>, vector<1x8x3xf32>
    %69 = vector.shape_cast %68 : vector<1x8x3xf32> to vector<8x3xf32>
    %70 = vector.extract_strided_slice %69 {offsets = [0, 1], sizes = [8, 1], strides = [1, 1]} : vector<8x3xf32> to vector<8x1xf32>
    %71 = vector.broadcast %70 : vector<8x1xf32> to vector<8x256xf32>
    %72 = arith.mulf %71, %66 : vector<8x256xf32>
    %73 = vector.extract_strided_slice %69 {offsets = [0, 0], sizes = [8, 1], strides = [1, 1]} : vector<8x3xf32> to vector<8x1xf32>
    %c1_i32_28 = arith.constant 1 : i32
    %74 = tpu.dynamic_rotate %66 by %c1_i32_28 dim 1 : vector<8x256xf32>, i32 -> vector<8x256xf32>
    %c1_i32_29 = arith.constant 1 : i32
    %75 = vector.broadcast %c1_i32_29 : i32 to vector<1x256xi32>
    %76 = arith.cmpi sge, %0, %75 : vector<1x256xi32>
    %cst_30 = arith.constant 0.000000e+00 : f32
    %77 = vector.shape_cast %76 : vector<1x256xi1> to vector<1x256xi1>
    %78 = vector.broadcast %77 : vector<1x256xi1> to vector<8x256xi1>
    %79 = vector.broadcast %cst_30 : f32 to vector<8x256xf32>
    %80 = arith.select %78, %74, %79 : vector<8x256xi1>, vector<8x256xf32>
    %81 = vector.broadcast %73 : vector<8x1xf32> to vector<8x256xf32>
    %82 = arith.mulf %81, %80 : vector<8x256xf32>
    %83 = arith.addf %72, %82 : vector<8x256xf32>
    %84 = vector.extract_strided_slice %69 {offsets = [0, 2], sizes = [8, 1], strides = [1, 1]} : vector<8x3xf32> to vector<8x1xf32>
    %c255_i32_31 = arith.constant 255 : i32
    %85 = tpu.dynamic_rotate %66 by %c255_i32_31 dim 1 : vector<8x256xf32>, i32 -> vector<8x256xf32>
    %c255_i32_32 = arith.constant 255 : i32
    %86 = vector.broadcast %c255_i32_32 : i32 to vector<1x256xi32>
    %87 = arith.cmpi slt, %0, %86 : vector<1x256xi32>
    %cst_33 = arith.constant 0.000000e+00 : f32
    %88 = vector.shape_cast %87 : vector<1x256xi1> to vector<1x256xi1>
    %89 = vector.broadcast %88 : vector<1x256xi1> to vector<8x256xi1>
    %90 = vector.broadcast %cst_33 : f32 to vector<8x256xf32>
    %91 = arith.select %89, %85, %90 : vector<8x256xi1>, vector<8x256xf32>
    %92 = vector.broadcast %84 : vector<8x1xf32> to vector<8x256xf32>
    %93 = arith.mulf %92, %91 : vector<8x256xf32>
    %94 = arith.addf %83, %93 : vector<8x256xf32>
    %95 = arith.index_cast %c0_i32 : i32 to index
    %c0_34 = arith.constant 0 : index
    %c0_35 = arith.constant 0 : index
    %96 = vector.load %arg7[%95, %c0_34, %c0_35] : memref<2x8x1xf32, #tpu.memory_space<vmem>>, vector<1x8x1xf32>
    %97 = vector.shape_cast %96 : vector<1x8x1xf32> to vector<8x1xf32>
    %98 = vector.broadcast %97 : vector<8x1xf32> to vector<8x256xf32>
    %99 = arith.addf %94, %98 : vector<8x256xf32>
    %100 = vector.shape_cast %99 : vector<8x256xf32> to vector<1x8x256xf32>
    %cst_36 = arith.constant dense<0.000000e+00> : vector<1xf32>
    %101 = vector.multi_reduction <add>, %100, %cst_36 [1, 2] : vector<1x8x256xf32> to vector<1xf32>
    %102 = vector.shape_cast %101 : vector<1xf32> to vector<1x1x1xf32>
    %103 = vector.extract %102[0, 0, 0] : f32 from vector<1x1x1xf32>
    %cst_37 = arith.constant 4.8828125E-4 : f32
    %104 = arith.mulf %103, %cst_37 : f32
    %105 = arith.mulf %99, %99 : vector<8x256xf32>
    %106 = vector.shape_cast %105 : vector<8x256xf32> to vector<1x8x256xf32>
    %cst_38 = arith.constant dense<0.000000e+00> : vector<1xf32>
    %107 = vector.multi_reduction <add>, %106, %cst_38 [1, 2] : vector<1x8x256xf32> to vector<1xf32>
    %108 = vector.shape_cast %107 : vector<1xf32> to vector<1x1x1xf32>
    %109 = vector.extract %108[0, 0, 0] : f32 from vector<1x1x1xf32>
    %cst_39 = arith.constant 4.8828125E-4 : f32
    %110 = arith.mulf %109, %cst_39 : f32
    %111 = arith.mulf %104, %104 : f32
    %112 = arith.subf %110, %111 : f32
    %113 = vector.broadcast %104 : f32 to vector<8x256xf32>
    %114 = arith.subf %99, %113 : vector<8x256xf32>
    %cst_40 = arith.constant 9.99999974E-6 : f32
    %115 = arith.addf %112, %cst_40 : f32
    %116 = math.rsqrt %115 : f32
    %117 = vector.broadcast %116 : f32 to vector<8x256xf32>
    %118 = arith.mulf %114, %117 : vector<8x256xf32>
    %119 = arith.index_cast %c0_i32 : i32 to index
    %c0_41 = arith.constant 0 : index
    %c0_42 = arith.constant 0 : index
    %120 = vector.load %arg8[%119, %c0_41, %c0_42] : memref<2x8x1xf32, #tpu.memory_space<vmem>>, vector<1x8x1xf32>
    %121 = vector.shape_cast %120 : vector<1x8x1xf32> to vector<8x1xf32>
    %122 = vector.broadcast %121 : vector<8x1xf32> to vector<8x256xf32>
    %123 = arith.mulf %118, %122 : vector<8x256xf32>
    %124 = arith.index_cast %c0_i32 : i32 to index
    %c0_43 = arith.constant 0 : index
    %c0_44 = arith.constant 0 : index
    %125 = vector.load %arg9[%124, %c0_43, %c0_44] : memref<2x8x1xf32, #tpu.memory_space<vmem>>, vector<1x8x1xf32>
    %126 = vector.shape_cast %125 : vector<1x8x1xf32> to vector<8x1xf32>
    %127 = vector.broadcast %126 : vector<8x1xf32> to vector<8x256xf32>
    %128 = arith.addf %123, %127 : vector<8x256xf32>
    %129 = arith.negf %128 : vector<8x256xf32>
    %130 = math.exp %129 : vector<8x256xf32>
    %cst_45 = arith.constant 1.000000e+00 : f32
    %131 = vector.broadcast %cst_45 : f32 to vector<8x256xf32>
    %132 = arith.addf %131, %130 : vector<8x256xf32>
    %133 = arith.divf %131, %132 : vector<8x256xf32>
    %134 = arith.mulf %128, %133 : vector<8x256xf32>
    %135 = arith.index_cast %c0_i32 : i32 to index
    %c0_46 = arith.constant 0 : index
    %c0_47 = arith.constant 0 : index
    %136 = vector.load %arg10[%135, %c0_46, %c0_47] : memref<2x32x8xf32, #tpu.memory_space<vmem>>, vector<1x32x8xf32>
    %137 = vector.shape_cast %136 : vector<1x32x8xf32> to vector<32x8xf32>
    %cst_48 = arith.constant dense<0.000000e+00> : vector<32x256xf32>
    %138 = tpu.matmul %137, %134, %cst_48 {dimension_numbers = #tpu.dot_dimension_numbers<[1], [0], [0], [1], [0, 0, 1, 1], [], []>} : vector<32x8xf32>, vector<8x256xf32>, vector<32x256xf32> -> vector<32x256xf32>
    %139 = arith.index_cast %c0_i32 : i32 to index
    %c0_49 = arith.constant 0 : index
    %c0_50 = arith.constant 0 : index
    %140 = vector.load %arg11[%139, %c0_49, %c0_50] : memref<2x32x1xf32, #tpu.memory_space<vmem>>, vector<1x32x1xf32>
    %141 = vector.shape_cast %140 : vector<1x32x1xf32> to vector<32x1xf32>
    %142 = vector.broadcast %141 : vector<32x1xf32> to vector<32x256xf32>
    %143 = arith.addf %138, %142 : vector<32x256xf32>
    %144 = arith.addf %2, %143 : vector<32x256xf32>
    %c1_i32_51 = arith.constant 1 : i32
    %145 = vector.shape_cast %144 : vector<32x256xf32> to vector<1x32x256xf32>
    %cst_52 = arith.constant dense<0.000000e+00> : vector<1xf32>
    %146 = vector.multi_reduction <add>, %145, %cst_52 [1, 2] : vector<1x32x256xf32> to vector<1xf32>
    %147 = vector.shape_cast %146 : vector<1xf32> to vector<1x1x1xf32>
    %148 = vector.extract %147[0, 0, 0] : f32 from vector<1x1x1xf32>
    %cst_53 = arith.constant 1.22070313E-4 : f32
    %149 = arith.mulf %148, %cst_53 : f32
    %150 = arith.mulf %144, %144 : vector<32x256xf32>
    %151 = vector.shape_cast %150 : vector<32x256xf32> to vector<1x32x256xf32>
    %cst_54 = arith.constant dense<0.000000e+00> : vector<1xf32>
    %152 = vector.multi_reduction <add>, %151, %cst_54 [1, 2] : vector<1x32x256xf32> to vector<1xf32>
    %153 = vector.shape_cast %152 : vector<1xf32> to vector<1x1x1xf32>
    %154 = vector.extract %153[0, 0, 0] : f32 from vector<1x1x1xf32>
    %cst_55 = arith.constant 1.22070313E-4 : f32
    %155 = arith.mulf %154, %cst_55 : f32
    %156 = arith.mulf %149, %149 : f32
    %157 = arith.subf %155, %156 : f32
    %158 = vector.broadcast %149 : f32 to vector<32x256xf32>
    %159 = arith.subf %144, %158 : vector<32x256xf32>
    %cst_56 = arith.constant 9.99999974E-6 : f32
    %160 = arith.addf %157, %cst_56 : f32
    %161 = math.rsqrt %160 : f32
    %162 = vector.broadcast %161 : f32 to vector<32x256xf32>
    %163 = arith.mulf %159, %162 : vector<32x256xf32>
    %164 = arith.index_cast %c1_i32_51 : i32 to index
    %c0_57 = arith.constant 0 : index
    %c0_58 = arith.constant 0 : index
    %165 = vector.load %arg2[%164, %c0_57, %c0_58] : memref<2x32x1xf32, #tpu.memory_space<vmem>>, vector<1x32x1xf32>
    %166 = vector.shape_cast %165 : vector<1x32x1xf32> to vector<32x1xf32>
    %167 = vector.broadcast %166 : vector<32x1xf32> to vector<32x256xf32>
    %168 = arith.mulf %163, %167 : vector<32x256xf32>
    %169 = arith.index_cast %c1_i32_51 : i32 to index
    %c0_59 = arith.constant 0 : index
    %c0_60 = arith.constant 0 : index
    %170 = vector.load %arg3[%169, %c0_59, %c0_60] : memref<2x32x1xf32, #tpu.memory_space<vmem>>, vector<1x32x1xf32>
    %171 = vector.shape_cast %170 : vector<1x32x1xf32> to vector<32x1xf32>
    %172 = vector.broadcast %171 : vector<32x1xf32> to vector<32x256xf32>
    %173 = arith.addf %168, %172 : vector<32x256xf32>
    %c1_i32_61 = arith.constant 1 : i32
    %174 = tpu.dynamic_rotate %173 by %c1_i32_61 dim 1 : vector<32x256xf32>, i32 -> vector<32x256xf32>
    %c1_i32_62 = arith.constant 1 : i32
    %175 = vector.broadcast %c1_i32_62 : i32 to vector<1x256xi32>
    %176 = arith.cmpi sge, %0, %175 : vector<1x256xi32>
    %cst_63 = arith.constant 0.000000e+00 : f32
    %177 = vector.shape_cast %176 : vector<1x256xi1> to vector<1x256xi1>
    %178 = vector.broadcast %177 : vector<1x256xi1> to vector<32x256xi1>
    %179 = vector.broadcast %cst_63 : f32 to vector<32x256xf32>
    %180 = arith.select %178, %174, %179 : vector<32x256xi1>, vector<32x256xf32>
    %c0_64 = arith.constant 0 : index
    %c0_65 = arith.constant 0 : index
    %181 = vector.load %arg13[%c0_64, %c0_65] : memref<96x256xf32, #tpu.memory_space<vmem>>, vector<32x256xf32>
    tpu.vector_store %arg13[%c0_64, %c0_65], %180 {strides = array<i32>} : memref<96x256xf32, #tpu.memory_space<vmem>>, vector<32x256xf32>,
    %c32_66 = arith.constant 32 : index
    %c0_67 = arith.constant 0 : index
    %182 = vector.load %arg13[%c32_66, %c0_67] : memref<96x256xf32, #tpu.memory_space<vmem>>, vector<32x256xf32>
    tpu.vector_store %arg13[%c32_66, %c0_67], %173 {strides = array<i32>} : memref<96x256xf32, #tpu.memory_space<vmem>>, vector<32x256xf32>,
    %c255_i32_68 = arith.constant 255 : i32
    %183 = tpu.dynamic_rotate %173 by %c255_i32_68 dim 1 : vector<32x256xf32>, i32 -> vector<32x256xf32>
    %c255_i32_69 = arith.constant 255 : i32
    %184 = vector.broadcast %c255_i32_69 : i32 to vector<1x256xi32>
    %185 = arith.cmpi slt, %0, %184 : vector<1x256xi32>
    %cst_70 = arith.constant 0.000000e+00 : f32
    %186 = vector.shape_cast %185 : vector<1x256xi1> to vector<1x256xi1>
    %187 = vector.broadcast %186 : vector<1x256xi1> to vector<32x256xi1>
    %188 = vector.broadcast %cst_70 : f32 to vector<32x256xf32>
    %189 = arith.select %187, %183, %188 : vector<32x256xi1>, vector<32x256xf32>
    %c64_71 = arith.constant 64 : index
    %c0_72 = arith.constant 0 : index
    %190 = vector.load %arg13[%c64_71, %c0_72] : memref<96x256xf32, #tpu.memory_space<vmem>>, vector<32x256xf32>
    tpu.vector_store %arg13[%c64_71, %c0_72], %189 {strides = array<i32>} : memref<96x256xf32, #tpu.memory_space<vmem>>, vector<32x256xf32>,
    %191 = arith.index_cast %c1_i32_51 : i32 to index
    %c0_73 = arith.constant 0 : index
    %c0_74 = arith.constant 0 : index
    %192 = vector.load %arg4[%191, %c0_73, %c0_74] : memref<2x16x96xf32, #tpu.memory_space<vmem>>, vector<1x16x96xf32>
    %193 = vector.shape_cast %192 : vector<1x16x96xf32> to vector<16x96xf32>
    %c0_75 = arith.constant 0 : index
    %c0_76 = arith.constant 0 : index
    %194 = vector.load %arg13[%c0_75, %c0_76] : memref<96x256xf32, #tpu.memory_space<vmem>>, vector<96x256xf32>
    %cst_77 = arith.constant dense<0.000000e+00> : vector<16x256xf32>
    %195 = tpu.matmul %193, %194, %cst_77 {dimension_numbers = #tpu.dot_dimension_numbers<[1], [0], [0], [1], [0, 0, 1, 1], [], []>} : vector<16x96xf32>, vector<96x256xf32>, vector<16x256xf32> -> vector<16x256xf32>
    %196 = arith.index_cast %c1_i32_51 : i32 to index
    %c0_78 = arith.constant 0 : index
    %c0_79 = arith.constant 0 : index
    %197 = vector.load %arg5[%196, %c0_78, %c0_79] : memref<2x16x1xf32, #tpu.memory_space<vmem>>, vector<1x16x1xf32>
    %198 = vector.shape_cast %197 : vector<1x16x1xf32> to vector<16x1xf32>
    %199 = vector.broadcast %198 : vector<16x1xf32> to vector<16x256xf32>
    %200 = arith.addf %195, %199 : vector<16x256xf32>
    %201 = vector.extract_strided_slice %200 {offsets = [0, 0], sizes = [8, 256], strides = [1, 1]} : vector<16x256xf32> to vector<8x256xf32>
    %202 = vector.extract_strided_slice %200 {offsets = [8, 0], sizes = [8, 256], strides = [1, 1]} : vector<16x256xf32> to vector<8x256xf32>
    %203 = arith.negf %202 : vector<8x256xf32>
    %204 = math.exp %203 : vector<8x256xf32>
    %cst_80 = arith.constant 1.000000e+00 : f32
    %205 = vector.broadcast %cst_80 : f32 to vector<8x256xf32>
    %206 = arith.addf %205, %204 : vector<8x256xf32>
    %207 = arith.divf %205, %206 : vector<8x256xf32>
    %208 = arith.mulf %201, %207 : vector<8x256xf32>
    %209 = arith.index_cast %c1_i32_51 : i32 to index
    %c0_81 = arith.constant 0 : index
    %c0_82 = arith.constant 0 : index
    %210 = vector.load %arg6[%209, %c0_81, %c0_82] : memref<2x8x3xf32, #tpu.memory_space<vmem>>, vector<1x8x3xf32>
    %211 = vector.shape_cast %210 : vector<1x8x3xf32> to vector<8x3xf32>
    %212 = vector.extract_strided_slice %211 {offsets = [0, 1], sizes = [8, 1], strides = [1, 1]} : vector<8x3xf32> to vector<8x1xf32>
    %213 = vector.broadcast %212 : vector<8x1xf32> to vector<8x256xf32>
    %214 = arith.mulf %213, %208 : vector<8x256xf32>
    %215 = vector.extract_strided_slice %211 {offsets = [0, 0], sizes = [8, 1], strides = [1, 1]} : vector<8x3xf32> to vector<8x1xf32>
    %c1_i32_83 = arith.constant 1 : i32
    %216 = tpu.dynamic_rotate %208 by %c1_i32_83 dim 1 : vector<8x256xf32>, i32 -> vector<8x256xf32>
    %c1_i32_84 = arith.constant 1 : i32
    %217 = vector.broadcast %c1_i32_84 : i32 to vector<1x256xi32>
    %218 = arith.cmpi sge, %0, %217 : vector<1x256xi32>
    %cst_85 = arith.constant 0.000000e+00 : f32
    %219 = vector.shape_cast %218 : vector<1x256xi1> to vector<1x256xi1>
    %220 = vector.broadcast %219 : vector<1x256xi1> to vector<8x256xi1>
    %221 = vector.broadcast %cst_85 : f32 to vector<8x256xf32>
    %222 = arith.select %220, %216, %221 : vector<8x256xi1>, vector<8x256xf32>
    %223 = vector.broadcast %215 : vector<8x1xf32> to vector<8x256xf32>
    %224 = arith.mulf %223, %222 : vector<8x256xf32>
    %225 = arith.addf %214, %224 : vector<8x256xf32>
    %226 = vector.extract_strided_slice %211 {offsets = [0, 2], sizes = [8, 1], strides = [1, 1]} : vector<8x3xf32> to vector<8x1xf32>
    %c255_i32_86 = arith.constant 255 : i32
    %227 = tpu.dynamic_rotate %208 by %c255_i32_86 dim 1 : vector<8x256xf32>, i32 -> vector<8x256xf32>
    %c255_i32_87 = arith.constant 255 : i32
    %228 = vector.broadcast %c255_i32_87 : i32 to vector<1x256xi32>
    %229 = arith.cmpi slt, %0, %228 : vector<1x256xi32>
    %cst_88 = arith.constant 0.000000e+00 : f32
    %230 = vector.shape_cast %229 : vector<1x256xi1> to vector<1x256xi1>
    %231 = vector.broadcast %230 : vector<1x256xi1> to vector<8x256xi1>
    %232 = vector.broadcast %cst_88 : f32 to vector<8x256xf32>
    %233 = arith.select %231, %227, %232 : vector<8x256xi1>, vector<8x256xf32>
    %234 = vector.broadcast %226 : vector<8x1xf32> to vector<8x256xf32>
    %235 = arith.mulf %234, %233 : vector<8x256xf32>
    %236 = arith.addf %225, %235 : vector<8x256xf32>
    %237 = arith.index_cast %c1_i32_51 : i32 to index
    %c0_89 = arith.constant 0 : index
    %c0_90 = arith.constant 0 : index
    %238 = vector.load %arg7[%237, %c0_89, %c0_90] : memref<2x8x1xf32, #tpu.memory_space<vmem>>, vector<1x8x1xf32>
    %239 = vector.shape_cast %238 : vector<1x8x1xf32> to vector<8x1xf32>
    %240 = vector.broadcast %239 : vector<8x1xf32> to vector<8x256xf32>
    %241 = arith.addf %236, %240 : vector<8x256xf32>
    %242 = vector.shape_cast %241 : vector<8x256xf32> to vector<1x8x256xf32>
    %cst_91 = arith.constant dense<0.000000e+00> : vector<1xf32>
    %243 = vector.multi_reduction <add>, %242, %cst_91 [1, 2] : vector<1x8x256xf32> to vector<1xf32>
    %244 = vector.shape_cast %243 : vector<1xf32> to vector<1x1x1xf32>
    %245 = vector.extract %244[0, 0, 0] : f32 from vector<1x1x1xf32>
    %cst_92 = arith.constant 4.8828125E-4 : f32
    %246 = arith.mulf %245, %cst_92 : f32
    %247 = arith.mulf %241, %241 : vector<8x256xf32>
    %248 = vector.shape_cast %247 : vector<8x256xf32> to vector<1x8x256xf32>
    %cst_93 = arith.constant dense<0.000000e+00> : vector<1xf32>
    %249 = vector.multi_reduction <add>, %248, %cst_93 [1, 2] : vector<1x8x256xf32> to vector<1xf32>
    %250 = vector.shape_cast %249 : vector<1xf32> to vector<1x1x1xf32>
    %251 = vector.extract %250[0, 0, 0] : f32 from vector<1x1x1xf32>
    %cst_94 = arith.constant 4.8828125E-4 : f32
    %252 = arith.mulf %251, %cst_94 : f32
    %253 = arith.mulf %246, %246 : f32
    %254 = arith.subf %252, %253 : f32
    %255 = vector.broadcast %246 : f32 to vector<8x256xf32>
    %256 = arith.subf %241, %255 : vector<8x256xf32>
    %cst_95 = arith.constant 9.99999974E-6 : f32
    %257 = arith.addf %254, %cst_95 : f32
    %258 = math.rsqrt %257 : f32
    %259 = vector.broadcast %258 : f32 to vector<8x256xf32>
    %260 = arith.mulf %256, %259 : vector<8x256xf32>
    %261 = arith.index_cast %c1_i32_51 : i32 to index
    %c0_96 = arith.constant 0 : index
    %c0_97 = arith.constant 0 : index
    %262 = vector.load %arg8[%261, %c0_96, %c0_97] : memref<2x8x1xf32, #tpu.memory_space<vmem>>, vector<1x8x1xf32>
    %263 = vector.shape_cast %262 : vector<1x8x1xf32> to vector<8x1xf32>
    %264 = vector.broadcast %263 : vector<8x1xf32> to vector<8x256xf32>
    %265 = arith.mulf %260, %264 : vector<8x256xf32>
    %266 = arith.index_cast %c1_i32_51 : i32 to index
    %c0_98 = arith.constant 0 : index
    %c0_99 = arith.constant 0 : index
    %267 = vector.load %arg9[%266, %c0_98, %c0_99] : memref<2x8x1xf32, #tpu.memory_space<vmem>>, vector<1x8x1xf32>
    %268 = vector.shape_cast %267 : vector<1x8x1xf32> to vector<8x1xf32>
    %269 = vector.broadcast %268 : vector<8x1xf32> to vector<8x256xf32>
    %270 = arith.addf %265, %269 : vector<8x256xf32>
    %271 = arith.negf %270 : vector<8x256xf32>
    %272 = math.exp %271 : vector<8x256xf32>
    %cst_100 = arith.constant 1.000000e+00 : f32
    %273 = vector.broadcast %cst_100 : f32 to vector<8x256xf32>
    %274 = arith.addf %273, %272 : vector<8x256xf32>
    %275 = arith.divf %273, %274 : vector<8x256xf32>
    %276 = arith.mulf %270, %275 : vector<8x256xf32>
    %277 = arith.index_cast %c1_i32_51 : i32 to index
    %c0_101 = arith.constant 0 : index
    %c0_102 = arith.constant 0 : index
    %278 = vector.load %arg10[%277, %c0_101, %c0_102] : memref<2x32x8xf32, #tpu.memory_space<vmem>>, vector<1x32x8xf32>
    %279 = vector.shape_cast %278 : vector<1x32x8xf32> to vector<32x8xf32>
    %cst_103 = arith.constant dense<0.000000e+00> : vector<32x256xf32>
    %280 = tpu.matmul %279, %276, %cst_103 {dimension_numbers = #tpu.dot_dimension_numbers<[1], [0], [0], [1], [0, 0, 1, 1], [], []>} : vector<32x8xf32>, vector<8x256xf32>, vector<32x256xf32> -> vector<32x256xf32>
    %281 = arith.index_cast %c1_i32_51 : i32 to index
    %c0_104 = arith.constant 0 : index
    %c0_105 = arith.constant 0 : index
    %282 = vector.load %arg11[%281, %c0_104, %c0_105] : memref<2x32x1xf32, #tpu.memory_space<vmem>>, vector<1x32x1xf32>
    %283 = vector.shape_cast %282 : vector<1x32x1xf32> to vector<32x1xf32>
    %284 = vector.broadcast %283 : vector<32x1xf32> to vector<32x256xf32>
    %285 = arith.addf %280, %284 : vector<32x256xf32>
    %286 = arith.addf %144, %285 : vector<32x256xf32>
    %c2_i32 = arith.constant 2 : i32
    %c0_106 = arith.constant 0 : index
    %c0_107 = arith.constant 0 : index
    %c0_108 = arith.constant 0 : index
    %287 = vector.load %arg12[%c0_106, %c0_107, %c0_108] : memref<1x32x256xf32, #tpu.memory_space<vmem>>, vector<1x32x256xf32>
    %288 = vector.shape_cast %287 : vector<1x32x256xf32> to vector<32x256xf32>
    %289 = vector.shape_cast %286 : vector<32x256xf32> to vector<1x32x256xf32>
    tpu.vector_store %arg12[%c0_106, %c0_107, %c0_108], %289 {strides = array<i32>} : memref<1x32x256xf32, #tpu.memory_space<vmem>>, vector<1x32x256xf32>,
    return
  }
  func.func @transform_0(%arg0: i32) -> (i32, i32, i32) {
    %c0_i32 = arith.constant 0 : i32
    %c0_i32_0 = arith.constant 0 : i32
    %c0_i32_1 = arith.constant 0 : i32
    return %arg0, %c0_i32, %c0_i32_0 : i32, i32, i32
  }
  func.func @transform_1(%arg0: i32) -> (i32, i32, i32) {
    %c0_i32 = arith.constant 0 : i32
    %c0_i32_0 = arith.constant 0 : i32
    %c0_i32_1 = arith.constant 0 : i32
    %c0_i32_2 = arith.constant 0 : i32
    return %c0_i32, %c0_i32_0, %c0_i32_1 : i32, i32, i32
  }
  func.func @transform_2(%arg0: i32) -> (i32, i32, i32) {
    %c0_i32 = arith.constant 0 : i32
    %c0_i32_0 = arith.constant 0 : i32
    %c0_i32_1 = arith.constant 0 : i32
    %c0_i32_2 = arith.constant 0 : i32
    return %c0_i32, %c0_i32_0, %c0_i32_1 : i32, i32, i32
  }
  func.func @transform_3(%arg0: i32) -> (i32, i32, i32) {
    %c0_i32 = arith.constant 0 : i32
    %c0_i32_0 = arith.constant 0 : i32
    %c0_i32_1 = arith.constant 0 : i32
    %c0_i32_2 = arith.constant 0 : i32
    return %c0_i32, %c0_i32_0, %c0_i32_1 : i32, i32, i32
  }
  func.func @transform_4(%arg0: i32) -> (i32, i32, i32) {
    %c0_i32 = arith.constant 0 : i32
    %c0_i32_0 = arith.constant 0 : i32
    %c0_i32_1 = arith.constant 0 : i32
    %c0_i32_2 = arith.constant 0 : i32
    return %c0_i32, %c0_i32_0, %c0_i32_1 : i32, i32, i32
  }
  func.func @transform_5(%arg0: i32) -> (i32, i32, i32) {
    %c0_i32 = arith.constant 0 : i32
    %c0_i32_0 = arith.constant 0 : i32
    %c0_i32_1 = arith.constant 0 : i32
    %c0_i32_2 = arith.constant 0 : i32
    return %c0_i32, %c0_i32_0, %c0_i32_1 : i32, i32, i32
  }
  func.func @transform_6(%arg0: i32) -> (i32, i32, i32) {
    %c0_i32 = arith.constant 0 : i32
    %c0_i32_0 = arith.constant 0 : i32
    %c0_i32_1 = arith.constant 0 : i32
    %c0_i32_2 = arith.constant 0 : i32
    return %c0_i32, %c0_i32_0, %c0_i32_1 : i32, i32, i32
  }
  func.func @transform_7(%arg0: i32) -> (i32, i32, i32) {
    %c0_i32 = arith.constant 0 : i32
    %c0_i32_0 = arith.constant 0 : i32
    %c0_i32_1 = arith.constant 0 : i32
    %c0_i32_2 = arith.constant 0 : i32
    return %c0_i32, %c0_i32_0, %c0_i32_1 : i32, i32, i32
  }
  func.func @transform_8(%arg0: i32) -> (i32, i32, i32) {
    %c0_i32 = arith.constant 0 : i32
    %c0_i32_0 = arith.constant 0 : i32
    %c0_i32_1 = arith.constant 0 : i32
    %c0_i32_2 = arith.constant 0 : i32
    return %c0_i32, %c0_i32_0, %c0_i32_1 : i32, i32, i32
  }
  func.func @transform_9(%arg0: i32) -> (i32, i32, i32) {
    %c0_i32 = arith.constant 0 : i32
    %c0_i32_0 = arith.constant 0 : i32
    %c0_i32_1 = arith.constant 0 : i32
    %c0_i32_2 = arith.constant 0 : i32
    return %c0_i32, %c0_i32_0, %c0_i32_1 : i32, i32, i32
  }
  func.func @transform_10(%arg0: i32) -> (i32, i32, i32) {
    %c0_i32 = arith.constant 0 : i32
    %c0_i32_0 = arith.constant 0 : i32
    %c0_i32_1 = arith.constant 0 : i32
    %c0_i32_2 = arith.constant 0 : i32
    return %c0_i32, %c0_i32_0, %c0_i32_1 : i32, i32, i32
  }
  func.func @transform_11(%arg0: i32) -> (i32, i32, i32) {
    %c0_i32 = arith.constant 0 : i32
    %c0_i32_0 = arith.constant 0 : i32
    %c0_i32_1 = arith.constant 0 : i32
    return %arg0, %c0_i32, %c0_i32_0 : i32, i32, i32
  }
}

</mosaic_0001>

<llo_original>
// kernel: _lambda_.1
$region0: #{_lambda_.1}
  #allocation0 [shape = 'u32[]', space=smem, size = 0x4, offset = 0x4, fixed_abs, tag = 'smem constant byte address 0x4 - core index']
  #allocation1 [shape = 'u32[72,128]{1,0:T(1,128)}', space=vmem, size = 0x9000, scoped, tag = 'internal scratch']
  #allocation2 [shape = 'f32[96,256]{1,0:T(8,128)}', space=vmem, size = 0x18000, scoped, tag = 'scratch operand']
  %s0 = inlined_call_operand.vmem [shape: f32[2,32,256], index: 0, kind: input, shape index: {}]
  %s1 = inlined_call_operand.vmem [shape: f32[2,32,1], index: 1, kind: input, shape index: {}]
  %s2 = inlined_call_operand.vmem [shape: f32[2,32,1], index: 2, kind: input, shape index: {}]
  %s3 = inlined_call_operand.vmem [shape: f32[2,16,96], index: 3, kind: input, shape index: {}]
  %s4 = inlined_call_operand.vmem [shape: f32[2,16,1], index: 4, kind: input, shape index: {}]
  %s5 = inlined_call_operand.vmem [shape: f32[2,8,3], index: 5, kind: input, shape index: {}]
  %s6 = inlined_call_operand.vmem [shape: f32[2,8,1], index: 6, kind: input, shape index: {}]
  %s7 = inlined_call_operand.vmem [shape: f32[2,8,1], index: 7, kind: input, shape index: {}]
  %s8 = inlined_call_operand.vmem [shape: f32[2,8,1], index: 8, kind: input, shape index: {}]
  %s9 = inlined_call_operand.vmem [shape: f32[2,32,8], index: 9, kind: input, shape index: {}]
  %s10 = inlined_call_operand.vmem [shape: f32[2,32,1], index: 10, kind: input, shape index: {}]
  %s11 = inlined_call_operand.hbm [shape: f32[2,32,256], index: 11, kind: output, shape index: {}]
  %s12 = sld [smem:[#allocation0]]
  $region77: #{_lambda_.1} parent=0
    _
  %s14 = ssub.s32 1, %s12
  %s15 = scalar_select 0, %s14, %s12
  $region1: #{_lambda_.1} parent=0
    #allocation3 [shape = 'u8[65536]{0}', space=vmem, size = 0x10000, scoped, tag = 'output window, operand 0']
    #allocation4 [shape = 's32[2]{0}', space=sflag, size = 0x8, scoped, tag = 'scoped memory for _lambda_.1']
    %16 = vsyncpa [#allocation4], 0
    %s17 = scalar_lea.sflag [#allocation4], 1
    %18 = vsyncpa %s17, 0
    loop: start=0, step=1, limit=4
    $region2: #{_lambda_.1} parent=1 // loop_pre_header
      _
    $region3: #{_lambda_.1} parent=1 // loop_header
      %s20 = sphi 0, %s24
      %p21 = scmp.ge.s32.totalorder %s20, 4
      %s30 = sphi 0, %s32
      %s33 = sphi 0, %s30
      %s34 = sphi 0, %s33
      %s50 = sphi 0, %s34
      %s54 = sphi 0, %s54
      %s56 = sphi 0, %s54
      %s57 = sphi 0, %s56
      %s71 = sphi 0, %s57
      %s75 = sphi 0, %s75
      %s77 = sphi 0, %s75
      %s78 = sphi 0, %s77
      %s92 = sphi 0, %s78
      %s96 = sphi 0, %s96
      %s98 = sphi 0, %s96
      %s99 = sphi 0, %s98
      %s113 = sphi 0, %s99
      %s117 = sphi 0, %s117
      %s119 = sphi 0, %s117
      %s120 = sphi 0, %s119
      %s134 = sphi 0, %s120
      %s138 = sphi 0, %s138
      %s140 = sphi 0, %s138
      %s141 = sphi 0, %s140
      %s155 = sphi 0, %s141
      %s159 = sphi 0, %s159
      %s161 = sphi 0, %s159
      %s162 = sphi 0, %s161
      %s176 = sphi 0, %s162
      %s180 = sphi 0, %s180
      %s182 = sphi 0, %s180
      %s183 = sphi 0, %s182
      %s197 = sphi 0, %s183
      %s201 = sphi 0, %s201
      %s203 = sphi 0, %s201
      %s204 = sphi 0, %s203
      %s218 = sphi 0, %s204
      %s222 = sphi 0, %s222
      %s224 = sphi 0, %s222
      %s225 = sphi 0, %s224
      %s239 = sphi 0, %s225
      %s243 = sphi 0, %s243
      %s245 = sphi 0, %s243
      %s246 = sphi 0, %s245
      %s260 = sphi 0, %s246
      %s266 = sphi 0, %s268
      %s269 = sphi 0, %s266
      %s270 = sphi 0, %s269
      %s286 = sphi 0, %s270
    $region4: #{_lambda_.1} parent=1 // loop_header_branch
      %23 = sbr.rel (%p21) target = $region8
    $region5: #{_lambda_.1} parent=1 // loop_body
      %s25 = ssub.s32 %s20, 1
      %s26 = ssub.s32 %s20, 2
      %s27 = sadd.s32 %s20, 1
      %s28 = ssub.s32 %s20, %s27
      %p29 = scmp.eq.s32.totalorder %s28, 0
      %s31 = sadd.s32 %s30, 1
      %s32 = scalar_select %p29, %s30, %s31
      %p35 = pneg %p29
      %p36 = scmp.eq.s32.totalorder %s20, 1
      %p37 = por %p35, %p36
      %p38 = scmp.ne.s32.totalorder %s30, %s33
      %p39 = scmp.eq.s32.totalorder %s20, 0
      %p40 = por %p38, %p39
      %p41 = scmp.ne.s32.totalorder %s30, %s33
      %p42 = scmp.eq.s32.totalorder %s25, 1
      %p43 = por %p41, %p42
      %p44 = scmp.ne.s32.totalorder %s33, %s34
      %p45 = scmp.eq.s32.totalorder %s25, 0
      %p46 = por %p44, %p45
      %p47 = scmp.ne.s32.totalorder %s33, %s34
      %p48 = scmp.eq.s32.totalorder %s26, 1
      %p49 = por %p47, %p48
      %p51 = scmp.ne.s32.totalorder %s34, %s50
      %p52 = scmp.eq.s32.totalorder %s26, 0
      %p53 = por %p51, %p52
      %s55 = sadd.s32 %s54, 1
      %p58 = scmp.eq.s32.totalorder %s20, 1
      %p59 = scmp.ne.s32.totalorder %s54, %s56
      %p60 = scmp.eq.s32.totalorder %s20, 0
      %p61 = por %p59, %p60
      %p62 = scmp.ne.s32.totalorder %s54, %s56
      %p63 = scmp.eq.s32.totalorder %s25, 1
      %p64 = por %p62, %p63
      %p65 = scmp.ne.s32.totalorder %s56, %s57
      %p66 = scmp.eq.s32.totalorder %s25, 0
      %p67 = por %p65, %p66
      %p68 = scmp.ne.s32.totalorder %s56, %s57
      %p69 = scmp.eq.s32.totalorder %s26, 1
      %p70 = por %p68, %p69
      %p72 = scmp.ne.s32.totalorder %s57, %s71
      %p73 = scmp.eq.s32.totalorder %s26, 0
      %p74 = por %p72, %p73
      %s76 = sadd.s32 %s75, 1
      %p79 = scmp.eq.s32.totalorder %s20, 1
      %p80 = scmp.ne.s32.totalorder %s75, %s77
      %p81 = scmp.eq.s32.totalorder %s20, 0
      %p82 = por %p80, %p81
      %p83 = scmp.ne.s32.totalorder %s75, %s77
      %p84 = scmp.eq.s32.totalorder %s25, 1
      %p85 = por %p83, %p84
      %p86 = scmp.ne.s32.totalorder %s77, %s78
      %p87 = scmp.eq.s32.totalorder %s25, 0
      %p88 = por %p86, %p87
      %p89 = scmp.ne.s32.totalorder %s77, %s78
      %p90 = scmp.eq.s32.totalorder %s26, 1
      %p91 = por %p89, %p90
      %p93 = scmp.ne.s32.totalorder %s78, %s92
      %p94 = scmp.eq.s32.totalorder %s26, 0
      %p95 = por %p93, %p94
      %s97 = sadd.s32 %s96, 1
      %p100 = scmp.eq.s32.totalorder %s20, 1
      %p101 = scmp.ne.s32.totalorder %s96, %s98
      %p102 = scmp.eq.s32.totalorder %s20, 0
      %p103 = por %p101, %p102
      %p104 = scmp.ne.s32.totalorder %s96, %s98
      %p105 = scmp.eq.s32.totalorder %s25, 1
      %p106 = por %p104, %p105
      %p107 = scmp.ne.s32.totalorder %s98, %s99
      %p108 = scmp.eq.s32.totalorder %s25, 0
      %p109 = por %p107, %p108
      %p110 = scmp.ne.s32.totalorder %s98, %s99
      %p111 = scmp.eq.s32.totalorder %s26, 1
      %p112 = por %p110, %p111
      %p114 = scmp.ne.s32.totalorder %s99, %s113
      %p115 = scmp.eq.s32.totalorder %s26, 0
      %p116 = por %p114, %p115
      %s118 = sadd.s32 %s117, 1
      %p121 = scmp.eq.s32.totalorder %s20, 1
      %p122 = scmp.ne.s32.totalorder %s117, %s119
      %p123 = scmp.eq.s32.totalorder %s20, 0
      %p124 = por %p122, %p123
      %p125 = scmp.ne.s32.totalorder %s117, %s119
      %p126 = scmp.eq.s32.totalorder %s25, 1
      %p127 = por %p125, %p126
      %p128 = scmp.ne.s32.totalorder %s119, %s120
      %p129 = scmp.eq.s32.totalorder %s25, 0
      %p130 = por %p128, %p129
      %p131 = scmp.ne.s32.totalorder %s119, %s120
      %p132 = scmp.eq.s32.totalorder %s26, 1
      %p133 = por %p131, %p132
      %p135 = scmp.ne.s32.totalorder %s120, %s134
      %p136 = scmp.eq.s32.totalorder %s26, 0
      %p137 = por %p135, %p136
      %s139 = sadd.s32 %s138, 1
      %p142 = scmp.eq.s32.totalorder %s20, 1
      %p143 = scmp.ne.s32.totalorder %s138, %s140
      %p144 = scmp.eq.s32.totalorder %s20, 0
      %p145 = por %p143, %p144
      %p146 = scmp.ne.s32.totalorder %s138, %s140
      %p147 = scmp.eq.s32.totalorder %s25, 1
      %p148 = por %p146, %p147
      %p149 = scmp.ne.s32.totalorder %s140, %s141
      %p150 = scmp.eq.s32.totalorder %s25, 0
      %p151 = por %p149, %p150
      %p152 = scmp.ne.s32.totalorder %s140, %s141
      %p153 = scmp.eq.s32.totalorder %s26, 1
      %p154 = por %p152, %p153
      %p156 = scmp.ne.s32.totalorder %s141, %s155
      %p157 = scmp.eq.s32.totalorder %s26, 0
      %p158 = por %p156, %p157
      %s160 = sadd.s32 %s159, 1
      %p163 = scmp.eq.s32.totalorder %s20, 1
      %p164 = scmp.ne.s32.totalorder %s159, %s161
      %p165 = scmp.eq.s32.totalorder %s20, 0
      %p166 = por %p164, %p165
      %p167 = scmp.ne.s32.totalorder %s159, %s161
      %p168 = scmp.eq.s32.totalorder %s25, 1
      %p169 = por %p167, %p168
      %p170 = scmp.ne.s32.totalorder %s161, %s162
      %p171 = scmp.eq.s32.totalorder %s25, 0
      %p172 = por %p170, %p171
      %p173 = scmp.ne.s32.totalorder %s161, %s162
      %p174 = scmp.eq.s32.totalorder %s26, 1
      %p175 = por %p173, %p174
      %p177 = scmp.ne.s32.totalorder %s162, %s176
      %p178 = scmp.eq.s32.totalorder %s26, 0
      %p179 = por %p177, %p178
      %s181 = sadd.s32 %s180, 1
      %p184 = scmp.eq.s32.totalorder %s20, 1
      %p185 = scmp.ne.s32.totalorder %s180, %s182
      %p186 = scmp.eq.s32.totalorder %s20, 0
      %p187 = por %p185, %p186
      %p188 = scmp.ne.s32.totalorder %s180, %s182
      %p189 = scmp.eq.s32.totalorder %s25, 1
      %p190 = por %p188, %p189
      %p191 = scmp.ne.s32.totalorder %s182, %s183
      %p192 = scmp.eq.s32.totalorder %s25, 0
      %p193 = por %p191, %p192
      %p194 = scmp.ne.s32.totalorder %s182, %s183
      %p195 = scmp.eq.s32.totalorder %s26, 1
      %p196 = por %p194, %p195
      %p198 = scmp.ne.s32.totalorder %s183, %s197
      %p199 = scmp.eq.s32.totalorder %s26, 0
      %p200 = por %p198, %p199
      %s202 = sadd.s32 %s201, 1
      %p205 = scmp.eq.s32.totalorder %s20, 1
      %p206 = scmp.ne.s32.totalorder %s201, %s203
      %p207 = scmp.eq.s32.totalorder %s20, 0
      %p208 = por %p206, %p207
      %p209 = scmp.ne.s32.totalorder %s201, %s203
      %p210 = scmp.eq.s32.totalorder %s25, 1
      %p211 = por %p209, %p210
      %p212 = scmp.ne.s32.totalorder %s203, %s204
      %p213 = scmp.eq.s32.totalorder %s25, 0
      %p214 = por %p212, %p213
      %p215 = scmp.ne.s32.totalorder %s203, %s204
      %p216 = scmp.eq.s32.totalorder %s26, 1
      %p217 = por %p215, %p216
      %p219 = scmp.ne.s32.totalorder %s204, %s218
      %p220 = scmp.eq.s32.totalorder %s26, 0
      %p221 = por %p219, %p220
      %s223 = sadd.s32 %s222, 1
      %p226 = scmp.eq.s32.totalorder %s20, 1
      %p227 = scmp.ne.s32.totalorder %s222, %s224
      %p228 = scmp.eq.s32.totalorder %s20, 0
      %p229 = por %p227, %p228
      %p230 = scmp.ne.s32.totalorder %s222, %s224
      %p231 = scmp.eq.s32.totalorder %s25, 1
      %p232 = por %p230, %p231
      %p233 = scmp.ne.s32.totalorder %s224, %s225
      %p234 = scmp.eq.s32.totalorder %s25, 0
      %p235 = por %p233, %p234
      %p236 = scmp.ne.s32.totalorder %s224, %s225
      %p237 = scmp.eq.s32.totalorder %s26, 1
      %p238 = por %p236, %p237
      %p240 = scmp.ne.s32.totalorder %s225, %s239
      %p241 = scmp.eq.s32.totalorder %s26, 0
      %p242 = por %p240, %p241
      %s244 = sadd.s32 %s243, 1
      %p247 = scmp.eq.s32.totalorder %s20, 1
      %p248 = scmp.ne.s32.totalorder %s243, %s245
      %p249 = scmp.eq.s32.totalorder %s20, 0
      %p250 = por %p248, %p249
      %p251 = scmp.ne.s32.totalorder %s243, %s245
      %p252 = scmp.eq.s32.totalorder %s25, 1
      %p253 = por %p251, %p252
      %p254 = scmp.ne.s32.totalorder %s245, %s246
      %p255 = scmp.eq.s32.totalorder %s25, 0
      %p256 = por %p254, %p255
      %p257 = scmp.ne.s32.totalorder %s245, %s246
      %p258 = scmp.eq.s32.totalorder %s26, 1
      %p259 = por %p257, %p258
      %p261 = scmp.ne.s32.totalorder %s246, %s260
      %p262 = scmp.eq.s32.totalorder %s26, 0
      %p263 = por %p261, %p262
      %s264 = ssub.s32 %s20, %s27
      %p265 = scmp.eq.s32.totalorder %s264, 0
      %s267 = sadd.s32 %s266, 1
      %s268 = scalar_select %p265, %s266, %s267
      %p271 = pneg %p265
      %p272 = scmp.eq.s32.totalorder %s20, 1
      %p273 = por %p271, %p272
      %p274 = scmp.ne.s32.totalorder %s266, %s269
      %p275 = scmp.eq.s32.totalorder %s20, 0
      %p276 = por %p274, %p275
      %p277 = scmp.ne.s32.totalorder %s266, %s269
      %p278 = scmp.eq.s32.totalorder %s25, 1
      %p279 = por %p277, %p278
      %p280 = scmp.ne.s32.totalorder %s269, %s270
      %p281 = scmp.eq.s32.totalorder %s25, 0
      %p282 = por %p280, %p281
      %p283 = scmp.ne.s32.totalorder %s269, %s270
      %p284 = scmp.eq.s32.totalorder %s26, 1
      %p285 = por %p283, %p284
      %p287 = scmp.ne.s32.totalorder %s270, %s286
      %p288 = scmp.eq.s32.totalorder %s26, 0
      %p289 = por %p287, %p288
      %p290 = scmp.le.s32.totalorder 1, %s20
      %p291 = scmp.lt.s32.totalorder %s20, 3
      %p292 = pnand %p290, %p291
      %p293 = pneg %p292
      // Predicated region
      $region9: #{_lambda_.1} parent=5 // pred_check
        _
      $region10: #{_lambda_.1} parent=5 // pred_check_branch
        %295 = sbr.rel (%p292) target = $region12
      $region11: #{_lambda_.1} parent=5 // pred_region
        %s296 = ssub.s32 %s20, 1
        // Predicated region
        $region13: #{_lambda_.1} parent=11 // pred_check
          %p297 = pneg %p67
        $region14: #{_lambda_.1} parent=11 // pred_check_branch
          %299 = sbr.rel (%p297) target = $region16
        $region15: #{_lambda_.1} parent=11 // pred_region
          _
        $region16: #{_lambda_.1} parent=11 // pred_fallthru
          _
        // Predicated region
        $region17: #{_lambda_.1} parent=11 // pred_check
          %p300 = pneg %p88
        $region18: #{_lambda_.1} parent=11 // pred_check_branch
          %302 = sbr.rel (%p300) target = $region20
        $region19: #{_lambda_.1} parent=11 // pred_region
          _
        $region20: #{_lambda_.1} parent=11 // pred_fallthru
          _
        // Predicated region
        $region21: #{_lambda_.1} parent=11 // pred_check
          %p303 = pneg %p109
        $region22: #{_lambda_.1} parent=11 // pred_check_branch
          %305 = sbr.rel (%p303) target = $region24
        $region23: #{_lambda_.1} parent=11 // pred_region
          _
        $region24: #{_lambda_.1} parent=11 // pred_fallthru
          _
        // Predicated region
        $region25: #{_lambda_.1} parent=11 // pred_check
          %p306 = pneg %p130
        $region26: #{_lambda_.1} parent=11 // pred_check_branch
          %308 = sbr.rel (%p306) target = $region28
        $region27: #{_lambda_.1} parent=11 // pred_region
          _
        $region28: #{_lambda_.1} parent=11 // pred_fallthru
          _
        // Predicated region
        $region29: #{_lambda_.1} parent=11 // pred_check
          %p309 = pneg %p151
        $region30: #{_lambda_.1} parent=11 // pred_check_branch
          %311 = sbr.rel (%p309) target = $region32
        $region31: #{_lambda_.1} parent=11 // pred_region
          _
        $region32: #{_lambda_.1} parent=11 // pred_fallthru
          _
        // Predicated region
        $region33: #{_lambda_.1} parent=11 // pred_check
          %p312 = pneg %p172
        $region34: #{_lambda_.1} parent=11 // pred_check_branch
          %314 = sbr.rel (%p312) target = $region36
        $region35: #{_lambda_.1} parent=11 // pred_region
          _
        $region36: #{_lambda_.1} parent=11 // pred_fallthru
          _
        // Predicated region
        $region37: #{_lambda_.1} parent=11 // pred_check
          %p315 = pneg %p193
        $region38: #{_lambda_.1} parent=11 // pred_check_branch
          %317 = sbr.rel (%p315) target = $region40
        $region39: #{_lambda_.1} parent=11 // pred_region
          _
        $region40: #{_lambda_.1} parent=11 // pred_fallthru
          _
        // Predicated region
        $region41: #{_lambda_.1} parent=11 // pred_check
          %p318 = pneg %p214
        $region42: #{_lambda_.1} parent=11 // pred_check_branch
          %320 = sbr.rel (%p318) target = $region44
        $region43: #{_lambda_.1} parent=11 // pred_region
          _
        $region44: #{_lambda_.1} parent=11 // pred_fallthru
          _
        // Predicated region
        $region45: #{_lambda_.1} parent=11 // pred_check
          %p321 = pneg %p235
        $region46: #{_lambda_.1} parent=11 // pred_check_branch
          %323 = sbr.rel (%p321) target = $region48
        $region47: #{_lambda_.1} parent=11 // pred_region
          _
        $region48: #{_lambda_.1} parent=11 // pred_fallthru
          _
        // Predicated region
        $region49: #{_lambda_.1} parent=11 // pred_check
          %p324 = pneg %p256
        $region50: #{_lambda_.1} parent=11 // pred_check_branch
          %326 = sbr.rel (%p324) target = $region52
        $region51: #{_lambda_.1} parent=11 // pred_region
          _
        $region52: #{_lambda_.1} parent=11 // pred_fallthru
          _
      $region12: #{_lambda_.1} parent=5 // pred_fallthru
        _
      %p327 = scmp.lt.s32.totalorder %s20, 2
      // Predicated region
      $region53: #{_lambda_.1} parent=5 // pred_check
        %p328 = pneg %p327
      $region54: #{_lambda_.1} parent=5 // pred_check_branch
        %330 = sbr.rel (%p328) target = $region56
      $region55: #{_lambda_.1} parent=5 // pred_region
        // Predicated region
        $region57: #{_lambda_.1} parent=55 // pred_check
          %p331 = pneg %p40
        $region58: #{_lambda_.1} parent=55 // pred_check_branch
          %333 = sbr.rel (%p331) target = $region60
        $region59: #{_lambda_.1} parent=55 // pred_region
          %p334 = scmp.lt.s32.totalorder %s20, 1
          %s335 = scalar_select %p334, %s20, 1
          %s336 = smul.addr %s335, 8
          %s337 = smul.addr %s336, 8
          %s338 = scalar_lea.vmem %s0, %s337
        $region60: #{_lambda_.1} parent=55 // pred_fallthru
          _
      $region56: #{_lambda_.1} parent=5 // pred_fallthru
        _
      %p339 = scmp.le.s32.totalorder 1, %s20
      %p340 = scmp.lt.s32.totalorder %s20, 3
      %p341 = pnand %p339, %p340
      %p342 = pneg %p341
      // Predicated region
      $region61: #{_lambda_.1} parent=5 // pred_check
        _
      $region62: #{_lambda_.1} parent=5 // pred_check_branch
        %344 = sbr.rel (%p341) target = $region64
      $region63: #{_lambda_.1} parent=5 // pred_region
        %s345 = ssub.s32 %s20, 1
        %p346 = scmp.lt.s32.totalorder %s25, 1
        %s347 = scalar_select %p346, %s25, 1
        %s348 = smul.addr %s347, 8
        %s349 = smul.addr %s348, 8
        %s350 = scalar_lea.vmem %s0, %s349
        %p351 = pneg %p46
        %p352 = pneg %p43
        %p353 = pneg %p67
        %p354 = pneg %p64
        %p355 = pneg %p88
        %p356 = pneg %p85
        %p357 = pneg %p109
        %p358 = pneg %p106
        %p359 = pneg %p130
        %p360 = pneg %p127
        %p361 = pneg %p151
        %p362 = pneg %p148
        %p363 = pneg %p172
        %p364 = pneg %p169
        %p365 = pneg %p193
        %p366 = pneg %p190
        %p367 = pneg %p214
        %p368 = pneg %p211
        %p369 = pneg %p235
        %p370 = pneg %p232
        %p371 = pneg %p256
        %p372 = pneg %p253
        %p373 = pneg %p282
        %p374 = pneg %p279
        %s375 = sand.u32 %s269, 1
        %s376 = scalar_lea.sflag [#allocation4], %s375
        %s377 = sand.u32 %s269, 1
        %s378 = smul.addr %s377, 64
        %s379 = scalar_lea.vmem [#allocation3], %s378
        %p380 = scmp.lt.s32.totalorder %s25, 1
        %s381 = scalar_select %p380, %s25, 1
        %s382 = smul.addr %s381, 8
        %s383 = smul.addr %s382, 8
        %s384 = scalar_lea.vmem %s0, %s383
        %v385 = vlaneseq
        %v386 = vand.u32 %v385, 127
        %v387 = vadd.s32 %v386, 128
        %v388 = vld [vmem:[%s384] sm:$0xff]
        %v389 = vld [vmem:[%s384 + $0x8] sm:$0xff]
        %v390 = vld [vmem:[%s384 + $0x10] sm:$0xff]
        %v391 = vld [vmem:[%s384 + $0x18] sm:$0xff]
        %v392 = vld [vmem:[%s384 + $0x20] sm:$0xff]
        %v393 = vld [vmem:[%s384 + $0x28] sm:$0xff]
        %v394 = vld [vmem:[%s384 + $0x30] sm:$0xff]
        %v395 = vld [vmem:[%s384 + $0x38] sm:$0xff]
        %v396 = vadd.f32 %v388, %v389
        %v397 = vadd.f32 %v396, %v390
        %v398 = vadd.f32 %v397, %v391
        %v399 = vadd.f32 %v398, %v392
        %v400 = vadd.f32 %v399, %v393
        %v401 = vadd.f32 %v400, %v394
        %v402 = vadd.f32 %v401, %v395
        %403 = vadd.xlane.f32.xlu0 %v402
        %v404 = vpop.xlane.xlu0 %403
        %v405 = vrot.slane %v404, 4
        %v406 = vadd.f32 %v404, %v405
        %v407 = vrot.slane %v406, 2
        %v408 = vadd.f32 %v406, %v407
        %v409 = vrot.slane %v408, 1
        %v410 = vadd.f32 %v408, %v409
        %s411 = vtos %v410
        %s412 = smul.f32 %s411, 0.00012207031
        %v413 = vmul.f32 %v388, %v388
        %v414 = vmul.f32 %v389, %v389
        %v415 = vmul.f32 %v390, %v390
        %v416 = vmul.f32 %v391, %v391
        %v417 = vmul.f32 %v392, %v392
        %v418 = vmul.f32 %v393, %v393
        %v419 = vmul.f32 %v394, %v394
        %v420 = vmul.f32 %v395, %v395
        %v421 = vadd.f32 %v413, %v414
        %v422 = vadd.f32 %v421, %v415
        %v423 = vadd.f32 %v422, %v416
        %v424 = vadd.f32 %v423, %v417
        %v425 = vadd.f32 %v424, %v418
        %v426 = vadd.f32 %v425, %v419
        %v427 = vadd.f32 %v426, %v420
        %428 = vadd.xlane.f32.xlu0 %v427
        %v429 = vpop.xlane.xlu0 %428
        %v430 = vrot.slane %v429, 4
        %v431 = vadd.f32 %v429, %v430
        %v432 = vrot.slane %v431, 2
        %v433 = vadd.f32 %v431, %v432
        %v434 = vrot.slane %v433, 1
        %v435 = vadd.f32 %v433, %v434
        %s436 = vtos %v435
        %s437 = smul.f32 %s436, 0.00012207031
        %s438 = smul.f32 %s412, %s412
        %s439 = ssub.f32 %s437, %s438
        %v440 = vstv %s412
        %v441 = vsub.f32 %v388, %v440
        %v442 = vsub.f32 %v389, %v440
        %v443 = vsub.f32 %v390, %v440
        %v444 = vsub.f32 %v391, %v440
        %v445 = vsub.f32 %v392, %v440
        %v446 = vsub.f32 %v393, %v440
        %v447 = vsub.f32 %v394, %v440
        %v448 = vsub.f32 %v395, %v440
        %s449 = sadd.f32 %s439, 1e-05
        %v450 = vstv %s449
        %v451 = vrsqrt.pop %v450
        %v452 = vmul.f32 %v451, %v450
        %v453 = vmul.f32 %v452, %v451
        %v454 = vmul.f32 0.5, %v453
        %v455 = vsub.f32 1.5, %v454
        %v456 = vmul.f32 %v451, %v455
        %vm457 = vweird.f32 %v450
        %vm458 = vweird.f32 %v451
        %vm459 = vmor %vm457, %vm458
        %v460 = vsel %vm459, %v451, %v456
        %s461 = vtos %v460
        %v462 = vstv %s461
        %v463 = vmul.f32 %v441, %v462
        %v464 = vmul.f32 %v442, %v462
        %v465 = vmul.f32 %v443, %v462
        %v466 = vmul.f32 %v444, %v462
        %v467 = vmul.f32 %v445, %v462
        %v468 = vmul.f32 %v446, %v462
        %v469 = vmul.f32 %v447, %v462
        %v470 = vmul.f32 %v448, %v462
        %v471 = vld [vmem:[%s1] sm:$0xff]
        %v472 = vld [vmem:[%s1 + $0x8] sm:$0xff]
        %v473 = vld [vmem:[%s1 + $0x10] sm:$0xff]
        %v474 = vld [vmem:[%s1 + $0x18] sm:$0xff]
        %476 = vset.pattern.permute.xlu0 0
        %477 = vperm.xlu0 %476, %v471
        %v478 = vpop.permute.xlu0 %477
        %481 = vset.pattern.permute.xlu0 0
        %482 = vperm.xlu0 %481, %v472
        %v483 = vpop.permute.xlu0 %482
        %486 = vset.pattern.permute.xlu0 0
        %487 = vperm.xlu0 %486, %v473
        %v488 = vpop.permute.xlu0 %487
        %491 = vset.pattern.permute.xlu0 0
        %492 = vperm.xlu0 %491, %v474
        %v493 = vpop.permute.xlu0 %492
        %v495 = vmul.f32 %v463, %v478
        %v496 = vmul.f32 %v464, %v478
        %v497 = vmul.f32 %v465, %v483
        %v498 = vmul.f32 %v466, %v483
        %v499 = vmul.f32 %v467, %v488
        %v500 = vmul.f32 %v468, %v488
        %v501 = vmul.f32 %v469, %v493
        %v502 = vmul.f32 %v470, %v493
        %v503 = vld [vmem:[%s2] sm:$0xff]
        %v504 = vld [vmem:[%s2 + $0x8] sm:$0xff]
        %v505 = vld [vmem:[%s2 + $0x10] sm:$0xff]
        %v506 = vld [vmem:[%s2 + $0x18] sm:$0xff]
        %508 = vset.pattern.permute.xlu0 0
        %509 = vperm.xlu0 %508, %v503
        %v510 = vpop.permute.xlu0 %509
        %513 = vset.pattern.permute.xlu0 0
        %514 = vperm.xlu0 %513, %v504
        %v515 = vpop.permute.xlu0 %514
        %518 = vset.pattern.permute.xlu0 0
        %519 = vperm.xlu0 %518, %v505
        %v520 = vpop.permute.xlu0 %519
        %523 = vset.pattern.permute.xlu0 0
        %524 = vperm.xlu0 %523, %v506
        %v525 = vpop.permute.xlu0 %524
        %v527 = vadd.f32 %v495, %v510
        %v528 = vadd.f32 %v496, %v510
        %v529 = vadd.f32 %v497, %v515
        %v530 = vadd.f32 %v498, %v515
        %v531 = vadd.f32 %v499, %v520
        %v532 = vadd.f32 %v500, %v520
        %v533 = vadd.f32 %v501, %v525
        %v534 = vadd.f32 %v502, %v525
        %535 = vrot.lane.b32.xlu0 %v527, 1
        %v536 = vpop.permute.xlu0 %535
        %537 = vrot.lane.b32.xlu0 %v529, 1
        %v538 = vpop.permute.xlu0 %537
        %539 = vrot.lane.b32.xlu0 %v531, 1
        %v540 = vpop.permute.xlu0 %539
        %541 = vrot.lane.b32.xlu0 %v533, 1
        %v542 = vpop.permute.xlu0 %541
        %543 = vrot.lane.b32.xlu0 %v528, 1
        %v544 = vpop.permute.xlu0 %543
        %545 = vrot.lane.b32.xlu0 %v530, 1
        %v546 = vpop.permute.xlu0 %545
        %547 = vrot.lane.b32.xlu0 %v532, 1
        %v548 = vpop.permute.xlu0 %547
        %549 = vrot.lane.b32.xlu0 %v534, 1
        %v550 = vpop.permute.xlu0 %549
        %vm551 = vcmp.lt.s32.totalorder %v386, 1
        %v552 = vsel %vm551, %v536, %v544
        %v553 = vsel %vm551, %v538, %v546
        %v554 = vsel %vm551, %v540, %v548
        %v555 = vsel %vm551, %v542, %v550
        %v556 = vsel %vm551, %v544, %v536
        %v557 = vsel %vm551, %v546, %v538
        %v558 = vsel %vm551, %v548, %v540
        %v559 = vsel %vm551, %v550, %v542
        %vm560 = vcmp.ge.s32.totalorder %v386, 1
        %vm561 = vcmp.ge.s32.totalorder %v387, 1
        %v562 = vsel %vm560, 1, 0
        %v563 = vsel %vm561, 1, 0
        %vm564 = vcmp.eq.s32.totalorder %v562, 1
        %vm565 = vcmp.eq.s32.totalorder %v563, 1
        %v566 = vsel %vm564, %v556, 0.0
        %v567 = vsel %vm565, %v552, 0.0
        %v568 = vsel %vm564, %v557, 0.0
        %v569 = vsel %vm565, %v553, 0.0
        %v570 = vsel %vm564, %v558, 0.0
        %v571 = vsel %vm565, %v554, 0.0
        %v572 = vsel %vm564, %v559, 0.0
        %v573 = vsel %vm565, %v555, 0.0
        %574 = vst [vmem:[#allocation2] sm:$0xff] %v566
        %575 = vst [vmem:[#allocation2 + $0x8] sm:$0xff] %v567
        %576 = vst [vmem:[#allocation2 + $0x10] sm:$0xff] %v568
        %577 = vst [vmem:[#allocation2 + $0x18] sm:$0xff] %v569
        %578 = vst [vmem:[#allocation2 + $0x20] sm:$0xff] %v570
        %579 = vst [vmem:[#allocation2 + $0x28] sm:$0xff] %v571
        %580 = vst [vmem:[#allocation2 + $0x30] sm:$0xff] %v572
        %581 = vst [vmem:[#allocation2 + $0x38] sm:$0xff] %v573
        %582 = vst [vmem:[#allocation2 + $0x40] sm:$0xff] %v527
        %583 = vst [vmem:[#allocation2 + $0x48] sm:$0xff] %v528
        %584 = vst [vmem:[#allocation2 + $0x50] sm:$0xff] %v529
        %585 = vst [vmem:[#allocation2 + $0x58] sm:$0xff] %v530
        %586 = vst [vmem:[#allocation2 + $0x60] sm:$0xff] %v531
        %587 = vst [vmem:[#allocation2 + $0x68] sm:$0xff] %v532
        %588 = vst [vmem:[#allocation2 + $0x70] sm:$0xff] %v533
        %589 = vst [vmem:[#allocation2 + $0x78] sm:$0xff] %v534
        %590 = vrot.lane.b32.xlu0 %v527, 127
        %v591 = vpop.permute.xlu0 %590
        %592 = vrot.lane.b32.xlu0 %v529, 127
        %v593 = vpop.permute.xlu0 %592
        %594 = vrot.lane.b32.xlu0 %v531, 127
        %v595 = vpop.permute.xlu0 %594
        %596 = vrot.lane.b32.xlu0 %v533, 127
        %v597 = vpop.permute.xlu0 %596
        %598 = vrot.lane.b32.xlu0 %v528, 127
        %v599 = vpop.permute.xlu0 %598
        %600 = vrot.lane.b32.xlu0 %v530, 127
        %v601 = vpop.permute.xlu0 %600
        %602 = vrot.lane.b32.xlu0 %v532, 127
        %v603 = vpop.permute.xlu0 %602
        %604 = vrot.lane.b32.xlu0 %v534, 127
        %v605 = vpop.permute.xlu0 %604
        %vm606 = vcmp.lt.s32.totalorder %v386, 127
        %v607 = vsel %vm606, %v591, %v599
        %v608 = vsel %vm606, %v593, %v601
        %v609 = vsel %vm606, %v595, %v603
        %v610 = vsel %vm606, %v597, %v605
        %v611 = vsel %vm606, %v599, %v591
        %v612 = vsel %vm606, %v601, %v593
        %v613 = vsel %vm606, %v603, %v595
        %v614 = vsel %vm606, %v605, %v597
        %vm615 = vcmp.lt.s32.totalorder %v386, 255
        %vm616 = vcmp.lt.s32.totalorder %v387, 255
        %v617 = vsel %vm615, 1, 0
        %v618 = vsel %vm616, 1, 0
        %vm619 = vcmp.eq.s32.totalorder %v617, 1
        %vm620 = vcmp.eq.s32.totalorder %v618, 1
        %v621 = vsel %vm619, %v607, 0.0
        %v622 = vsel %vm620, %v611, 0.0
        %v623 = vsel %vm619, %v608, 0.0
        %v624 = vsel %vm620, %v612, 0.0
        %v625 = vsel %vm619, %v609, 0.0
        %v626 = vsel %vm620, %v613, 0.0
        %v627 = vsel %vm619, %v610, 0.0
        %v628 = vsel %vm620, %v614, 0.0
        %629 = vst [vmem:[#allocation2 + $0x80] sm:$0xff] %v621
        %630 = vst [vmem:[#allocation2 + $0x88] sm:$0xff] %v622
        %631 = vst [vmem:[#allocation2 + $0x90] sm:$0xff] %v623
        %632 = vst [vmem:[#allocation2 + $0x98] sm:$0xff] %v624
        %633 = vst [vmem:[#allocation2 + $0xa0] sm:$0xff] %v625
        %634 = vst [vmem:[#allocation2 + $0xa8] sm:$0xff] %v626
        %635 = vst [vmem:[#allocation2 + $0xb0] sm:$0xff] %v627
        %636 = vst [vmem:[#allocation2 + $0xb8] sm:$0xff] %v628
        %v637 = vld [vmem:[%s3] sm:$0xff]
        %v638 = vld [vmem:[%s3 + $0x8] sm:$0xff]
        %v639 = vld [vmem:[#allocation2] sm:$0xff]
        %v640 = vld [vmem:[#allocation2 + $0x8] sm:$0xff]
        %v641 = vld [vmem:[#allocation2 + $0x10] sm:$0xff]
        %v642 = vld [vmem:[#allocation2 + $0x18] sm:$0xff]
        %v643 = vld [vmem:[#allocation2 + $0x20] sm:$0xff]
        %v644 = vld [vmem:[#allocation2 + $0x28] sm:$0xff]
        %v645 = vld [vmem:[#allocation2 + $0x30] sm:$0xff]
        %v646 = vld [vmem:[#allocation2 + $0x38] sm:$0xff]
        %v647 = vld [vmem:[#allocation2 + $0x40] sm:$0xff]
        %v648 = vld [vmem:[#allocation2 + $0x48] sm:$0xff]
        %v649 = vld [vmem:[#allocation2 + $0x50] sm:$0xff]
        %v650 = vld [vmem:[#allocation2 + $0x58] sm:$0xff]
        %v651 = vld [vmem:[#allocation2 + $0x60] sm:$0xff]
        %v652 = vld [vmem:[#allocation2 + $0x68] sm:$0xff]
        %v653 = vld [vmem:[#allocation2 + $0x70] sm:$0xff]
        %v654 = vld [vmem:[#allocation2 + $0x78] sm:$0xff]
        %v655 = vld [vmem:[#allocation2 + $0x80] sm:$0xff]
        %v656 = vld [vmem:[#allocation2 + $0x88] sm:$0xff]
        %v657 = vld [vmem:[#allocation2 + $0x90] sm:$0xff]
        %v658 = vld [vmem:[#allocation2 + $0x98] sm:$0xff]
        %v659 = vld [vmem:[#allocation2 + $0xa0] sm:$0xff]
        %v660 = vld [vmem:[#allocation2 + $0xa8] sm:$0xff]
        %v661 = vld [vmem:[#allocation2 + $0xb0] sm:$0xff]
        %v662 = vld [vmem:[#allocation2 + $0xb8] sm:$0xff]
        %v663 = vld [vmem:[%s4] sm:$0xff]
        %v664 = vld [vmem:[%s4 + $0x8] sm:$0xff]
        %666 = vset.pattern.permute.xlu0 0
        %667 = vperm.xlu0 %666, %v663
        %v668 = vpop.permute.xlu0 %667
        %671 = vset.pattern.permute.xlu0 0
        %672 = vperm.xlu0 %671, %v664
        %v673 = vpop.permute.xlu0 %672
        %vm675 = vcmask 785408
        %v677 = vsel %vm675, %v637, 0
        %v680 = vsel %vm675, %v638, 0
        %682 = vmatpush.msra.mxu0 0.0
        %683 = vmatpush.msra.mxu0 0.0
        %684 = vmatpush.msra.mxu0 0.0
        %685 = vmatpush.msra.mxu0 0.0
        %686 = vmatpush.msra.mxu0 %v661
        %687 = vmatpush.msra.mxu0 %v659
        %688 = vmatpush.msra.mxu0 %v657
        %689 = vmatpush.msra.mxu0 %v655
        %690 = vmatpush.msra.mxu0 %v653
        %691 = vmatpush.msra.mxu0 %v651
        %692 = vmatpush.msra.mxu0 %v649
        %693 = vmatpush.msra.mxu0 %v647
        %694 = vmatpush.msra.mxu0 %v645
        %695 = vmatpush.msra.mxu0 %v643
        %696 = vmatpush.msra.mxu0 %v641
        %697 = vmatpush.msra.mxu0 %v639
        %698 = vmatmul.f32.gmra.mxu0 %v677
        %v699 = vpop.f32.mrf.mxu0
        %v700 = vadd.f32 %v668, %v699
        %701 = vmatmul.f32.gmra.mxu0 %v680
        %v702 = vpop.f32.mrf.mxu0
        %v703 = vadd.f32 %v673, %v702
        %704 = vdwg.mxu0
        %705 = vmatpush.msra.mxu0 0.0
        %706 = vmatpush.msra.mxu0 0.0
        %707 = vmatpush.msra.mxu0 0.0
        %708 = vmatpush.msra.mxu0 0.0
        %709 = vmatpush.msra.mxu0 %v662
        %710 = vmatpush.msra.mxu0 %v660
        %711 = vmatpush.msra.mxu0 %v658
        %712 = vmatpush.msra.mxu0 %v656
        %713 = vmatpush.msra.mxu0 %v654
        %714 = vmatpush.msra.mxu0 %v652
        %715 = vmatpush.msra.mxu0 %v650
        %716 = vmatpush.msra.mxu0 %v648
        %717 = vmatpush.msra.mxu0 %v646
        %718 = vmatpush.msra.mxu0 %v644
        %719 = vmatpush.msra.mxu0 %v642
        %720 = vmatpush.msra.mxu0 %v640
        %721 = vmatmul.f32.gmra.mxu0 %v677
        %v722 = vpop.f32.mrf.mxu0
        %v723 = vadd.f32 %v668, %v722
        %724 = vmatmul.f32.gmra.mxu0 %v680
        %v725 = vpop.f32.mrf.mxu0
        %v726 = vadd.f32 %v673, %v725
        %727 = vdwg.mxu0
        %v728 = vxor.u32 %v703, 2147483648
        %v729 = vxor.u32 %v726, 2147483648
        %v730 = vmul.f32 %v728, 1.442695
        %v731 = vpow.pop %v730
        %v732 = vmul.f32 %v729, 1.442695
        %v733 = vpow.pop %v732
        %v734 = vadd.f32 %v731, 1.0
        %v735 = vadd.f32 %v733, 1.0
        %v736 = vrcp.pop %v734
        %v737 = vmul.f32 %v734, %v736
        %v738 = vsub.f32 1.0, %v737
        %v739 = vmul.f32 %v736, %v738
        %v740 = vadd.f32 %v736, %v739
        %vm741 = vweird.f32 %v734
        %vm742 = vweird.f32 %v736
        %vm743 = vmor %vm741, %vm742
        %v744 = vsel %vm743, %v736, %v740
        %v745 = vand.u32 2147483647, %v734
        %vm746 = vcmp.eq.f32.partialorder %v745, 8.507059e+37
        %v747 = vand.u32 %v734, 2147483648
        %v748 = vor.u32 1.1754944e-38, %v747
        %v749 = vsel %vm746, %v748, %v744
        %v750 = vmul.f32 1.0, %v749
        %v751 = vrcp.pop %v735
        %v752 = vmul.f32 %v735, %v751
        %v753 = vsub.f32 1.0, %v752
        %v754 = vmul.f32 %v751, %v753
        %v755 = vadd.f32 %v751, %v754
        %vm756 = vweird.f32 %v735
        %vm757 = vweird.f32 %v751
        %vm758 = vmor %vm756, %vm757
        %v759 = vsel %vm758, %v751, %v755
        %v760 = vand.u32 2147483647, %v735
        %vm761 = vcmp.eq.f32.partialorder %v760, 8.507059e+37
        %v762 = vand.u32 %v735, 2147483648
        %v763 = vor.u32 1.1754944e-38, %v762
        %v764 = vsel %vm761, %v763, %v759
        %v765 = vmul.f32 1.0, %v764
        %v766 = vmul.f32 %v700, %v750
        %v767 = vmul.f32 %v723, %v765
        %v768 = vld [vmem:[%s5] sm:$0xff]
        %770 = vset.pattern.permute.xlu0 1
        %771 = vperm.xlu0 %770, %v768
        %v772 = vpop.permute.xlu0 %771
        %v774 = vmul.f32 %v772, %v766
        %v775 = vmul.f32 %v772, %v767
        %776 = vrot.lane.b32.xlu0 %v766, 1
        %v777 = vpop.permute.xlu0 %776
        %778 = vrot.lane.b32.xlu0 %v767, 1
        %v779 = vpop.permute.xlu0 %778
        %v780 = vsel %vm551, %v777, %v779
        %v781 = vsel %vm551, %v779, %v777
        %v782 = vsel %vm564, %v781, 0.0
        %v783 = vsel %vm565, %v780, 0.0
        %784 = vset.pattern.permute.xlu0 0
        %785 = vperm.xlu0 %784, %v768
        %v786 = vpop.permute.xlu0 %785
        %v788 = vmul.f32 %v786, %v782
        %v789 = vmul.f32 %v786, %v783
        %v790 = vadd.f32 %v774, %v788
        %v791 = vadd.f32 %v775, %v789
        %792 = vrot.lane.b32.xlu0 %v766, 127
        %v793 = vpop.permute.xlu0 %792
        %794 = vrot.lane.b32.xlu0 %v767, 127
        %v795 = vpop.permute.xlu0 %794
        %v796 = vsel %vm606, %v793, %v795
        %v797 = vsel %vm606, %v795, %v793
        %v798 = vsel %vm619, %v796, 0.0
        %v799 = vsel %vm620, %v797, 0.0
        %800 = vset.pattern.permute.xlu0 2
        %801 = vperm.xlu0 %800, %v768
        %v802 = vpop.permute.xlu0 %801
        %v804 = vmul.f32 %v802, %v798
        %v805 = vmul.f32 %v802, %v799
        %v806 = vadd.f32 %v790, %v804
        %v807 = vadd.f32 %v791, %v805
        %v808 = vld [vmem:[%s6] sm:$0xff]
        %810 = vset.pattern.permute.xlu0 0
        %811 = vperm.xlu0 %810, %v808
        %v812 = vpop.permute.xlu0 %811
        %v814 = vadd.f32 %v806, %v812
        %v815 = vadd.f32 %v807, %v812
        %v816 = vadd.f32 %v814, %v815
        %817 = vadd.xlane.f32.xlu0 %v816
        %v818 = vpop.xlane.xlu0 %817
        %v819 = vrot.slane %v818, 4
        %v820 = vadd.f32 %v818, %v819
        %v821 = vrot.slane %v820, 2
        %v822 = vadd.f32 %v820, %v821
        %v823 = vrot.slane %v822, 1
        %v824 = vadd.f32 %v822, %v823
        %s825 = vtos %v824
        %s826 = smul.f32 %s825, 0.00048828125
        %v827 = vmul.f32 %v814, %v814
        %v828 = vmul.f32 %v815, %v815
        %v829 = vadd.f32 %v827, %v828
        %830 = vadd.xlane.f32.xlu0 %v829
        %v831 = vpop.xlane.xlu0 %830
        %v832 = vrot.slane %v831, 4
        %v833 = vadd.f32 %v831, %v832
        %v834 = vrot.slane %v833, 2
        %v835 = vadd.f32 %v833, %v834
        %v836 = vrot.slane %v835, 1
        %v837 = vadd.f32 %v835, %v836
        %s838 = vtos %v837
        %s839 = smul.f32 %s838, 0.00048828125
        %s840 = smul.f32 %s826, %s826
        %s841 = ssub.f32 %s839, %s840
        %v842 = vstv %s826
        %v843 = vsub.f32 %v814, %v842
        %v844 = vsub.f32 %v815, %v842
        %s845 = sadd.f32 %s841, 1e-05
        %v846 = vstv %s845
        %v847 = vrsqrt.pop %v846
        %v848 = vmul.f32 %v847, %v846
        %v849 = vmul.f32 %v848, %v847
        %v850 = vmul.f32 0.5, %v849
        %v851 = vsub.f32 1.5, %v850
        %v852 = vmul.f32 %v847, %v851
        %vm853 = vweird.f32 %v846
        %vm854 = vweird.f32 %v847
        %vm855 = vmor %vm853, %vm854
        %v856 = vsel %vm855, %v847, %v852
        %s857 = vtos %v856
        %v858 = vstv %s857
        %v859 = vmul.f32 %v843, %v858
        %v860 = vmul.f32 %v844, %v858
        %v861 = vld [vmem:[%s7] sm:$0xff]
        %863 = vset.pattern.permute.xlu0 0
        %864 = vperm.xlu0 %863, %v861
        %v865 = vpop.permute.xlu0 %864
        %v867 = vmul.f32 %v859, %v865
        %v868 = vmul.f32 %v860, %v865
        %v869 = vld [vmem:[%s8] sm:$0xff]
        %871 = vset.pattern.permute.xlu0 0
        %872 = vperm.xlu0 %871, %v869
        %v873 = vpop.permute.xlu0 %872
        %v875 = vadd.f32 %v867, %v873
        %v876 = vadd.f32 %v868, %v873
        %v877 = vxor.u32 %v875, 2147483648
        %v878 = vxor.u32 %v876, 2147483648
        %v879 = vmul.f32 %v877, 1.442695
        %v880 = vpow.pop %v879
        %v881 = vmul.f32 %v878, 1.442695
        %v882 = vpow.pop %v881
        %v883 = vadd.f32 %v880, 1.0
        %v884 = vadd.f32 %v882, 1.0
        %v885 = vrcp.pop %v883
        %v886 = vmul.f32 %v883, %v885
        %v887 = vsub.f32 1.0, %v886
        %v888 = vmul.f32 %v885, %v887
        %v889 = vadd.f32 %v885, %v888
        %vm890 = vweird.f32 %v883
        %vm891 = vweird.f32 %v885
        %vm892 = vmor %vm890, %vm891
        %v893 = vsel %vm892, %v885, %v889
        %v894 = vand.u32 2147483647, %v883
        %vm895 = vcmp.eq.f32.partialorder %v894, 8.507059e+37
        %v896 = vand.u32 %v883, 2147483648
        %v897 = vor.u32 1.1754944e-38, %v896
        %v898 = vsel %vm895, %v897, %v893
        %v899 = vmul.f32 1.0, %v898
        %v900 = vrcp.pop %v884
        %v901 = vmul.f32 %v884, %v900
        %v902 = vsub.f32 1.0, %v901
        %v903 = vmul.f32 %v900, %v902
        %v904 = vadd.f32 %v900, %v903
        %vm905 = vweird.f32 %v884
        %vm906 = vweird.f32 %v900
        %vm907 = vmor %vm905, %vm906
        %v908 = vsel %vm907, %v900, %v904
        %v909 = vand.u32 2147483647, %v884
        %vm910 = vcmp.eq.f32.partialorder %v909, 8.507059e+37
        %v911 = vand.u32 %v884, 2147483648
        %v912 = vor.u32 1.1754944e-38, %v911
        %v913 = vsel %vm910, %v912, %v908
        %v914 = vmul.f32 1.0, %v913
        %v915 = vmul.f32 %v875, %v899
        %v916 = vmul.f32 %v876, %v914
        %v917 = vld [vmem:[%s9] sm:$0xff]
        %v918 = vld [vmem:[%s9 + $0x8] sm:$0xff]
        %v919 = vld [vmem:[%s9 + $0x10] sm:$0xff]
        %v920 = vld [vmem:[%s9 + $0x18] sm:$0xff]
        %v921 = vld [vmem:[%s10] sm:$0xff]
        %v922 = vld [vmem:[%s10 + $0x8] sm:$0xff]
        %v923 = vld [vmem:[%s10 + $0x10] sm:$0xff]
        %v924 = vld [vmem:[%s10 + $0x18] sm:$0xff]
        %926 = vset.pattern.permute.xlu0 0
        %927 = vperm.xlu0 %926, %v921
        %v928 = vpop.permute.xlu0 %927
        %931 = vset.pattern.permute.xlu0 0
        %932 = vperm.xlu0 %931, %v922
        %v933 = vpop.permute.xlu0 %932
        %936 = vset.pattern.permute.xlu0 0
        %937 = vperm.xlu0 %936, %v923
        %v938 = vpop.permute.xlu0 %937
        %941 = vset.pattern.permute.xlu0 0
        %942 = vperm.xlu0 %941, %v924
        %v943 = vpop.permute.xlu0 %942
        %vm945 = vcmask 64512
        %v947 = vsel %vm945, %v917, 0
        %v950 = vsel %vm945, %v918, 0
        %v953 = vsel %vm945, %v919, 0
        %v956 = vsel %vm945, %v920, 0
        %958 = vmatpush.msra.mxu0 0.0
        %959 = vmatpush.msra.mxu0 0.0
        %960 = vmatpush.msra.mxu0 0.0
        %961 = vmatpush.msra.mxu0 0.0
        %962 = vmatpush.msra.mxu0 0.0
        %963 = vmatpush.msra.mxu0 0.0
        %964 = vmatpush.msra.mxu0 0.0
        %965 = vmatpush.msra.mxu0 0.0
        %966 = vmatpush.msra.mxu0 0.0
        %967 = vmatpush.msra.mxu0 0.0
        %968 = vmatpush.msra.mxu0 0.0
        %969 = vmatpush.msra.mxu0 0.0
        %970 = vmatpush.msra.mxu0 0.0
        %971 = vmatpush.msra.mxu0 0.0
        %972 = vmatpush.msra.mxu0 0.0
        %973 = vmatpush.msra.mxu0 %v915
        %974 = vmatmul.f32.gmra.mxu0 %v947
        %v975 = vpop.f32.mrf.mxu0
        %v976 = vadd.f32 %v928, %v975
        %977 = vmatmul.f32.gmra.mxu0 %v950
        %v978 = vpop.f32.mrf.mxu0
        %v979 = vadd.f32 %v933, %v978
        %980 = vmatmul.f32.gmra.mxu0 %v953
        %v981 = vpop.f32.mrf.mxu0
        %v982 = vadd.f32 %v938, %v981
        %983 = vmatmul.f32.gmra.mxu0 %v956
        %v984 = vpop.f32.mrf.mxu0
        %v985 = vadd.f32 %v943, %v984
        %986 = vdwg.mxu0
        %987 = vmatpush.msra.mxu0 0.0
        %988 = vmatpush.msra.mxu0 0.0
        %989 = vmatpush.msra.mxu0 0.0
        %990 = vmatpush.msra.mxu0 0.0
        %991 = vmatpush.msra.mxu0 0.0
        %992 = vmatpush.msra.mxu0 0.0
        %993 = vmatpush.msra.mxu0 0.0
        %994 = vmatpush.msra.mxu0 0.0
        %995 = vmatpush.msra.mxu0 0.0
        %996 = vmatpush.msra.mxu0 0.0
        %997 = vmatpush.msra.mxu0 0.0
        %998 = vmatpush.msra.mxu0 0.0
        %999 = vmatpush.msra.mxu0 0.0
        %1000 = vmatpush.msra.mxu0 0.0
        %1001 = vmatpush.msra.mxu0 0.0
        %1002 = vmatpush.msra.mxu0 %v916
        %1003 = vmatmul.f32.gmra.mxu0 %v947
        %v1004 = vpop.f32.mrf.mxu0
        %v1005 = vadd.f32 %v928, %v1004
        %1006 = vmatmul.f32.gmra.mxu0 %v950
        %v1007 = vpop.f32.mrf.mxu0
        %v1008 = vadd.f32 %v933, %v1007
        %1009 = vmatmul.f32.gmra.mxu0 %v953
        %v1010 = vpop.f32.mrf.mxu0
        %v1011 = vadd.f32 %v938, %v1010
        %1012 = vmatmul.f32.gmra.mxu0 %v956
        %v1013 = vpop.f32.mrf.mxu0
        %v1014 = vadd.f32 %v943, %v1013
        %1015 = vdwg.mxu0
        %v1016 = vadd.f32 %v388, %v976
        %v1017 = vadd.f32 %v389, %v1005
        %v1018 = vadd.f32 %v390, %v979
        %v1019 = vadd.f32 %v391, %v1008
        %v1020 = vadd.f32 %v392, %v982
        %v1021 = vadd.f32 %v393, %v1011
        %v1022 = vadd.f32 %v394, %v985
        %v1023 = vadd.f32 %v395, %v1014
        %v1024 = vadd.f32 %v1016, %v1017
        %v1025 = vadd.f32 %v1024, %v1018
        %v1026 = vadd.f32 %v1025, %v1019
        %v1027 = vadd.f32 %v1026, %v1020
        %v1028 = vadd.f32 %v1027, %v1021
        %v1029 = vadd.f32 %v1028, %v1022
        %v1030 = vadd.f32 %v1029, %v1023
        %1031 = vadd.xlane.f32.xlu0 %v1030
        %v1032 = vpop.xlane.xlu0 %1031
        %v1033 = vrot.slane %v1032, 4
        %v1034 = vadd.f32 %v1032, %v1033
        %v1035 = vrot.slane %v1034, 2
        %v1036 = vadd.f32 %v1034, %v1035
        %v1037 = vrot.slane %v1036, 1
        %v1038 = vadd.f32 %v1036, %v1037
        %s1039 = vtos %v1038
        %s1040 = smul.f32 %s1039, 0.00012207031
        %v1041 = vmul.f32 %v1016, %v1016
        %v1042 = vmul.f32 %v1017, %v1017
        %v1043 = vmul.f32 %v1018, %v1018
        %v1044 = vmul.f32 %v1019, %v1019
        %v1045 = vmul.f32 %v1020, %v1020
        %v1046 = vmul.f32 %v1021, %v1021
        %v1047 = vmul.f32 %v1022, %v1022
        %v1048 = vmul.f32 %v1023, %v1023
        %v1049 = vadd.f32 %v1041, %v1042
        %v1050 = vadd.f32 %v1049, %v1043
        %v1051 = vadd.f32 %v1050, %v1044
        %v1052 = vadd.f32 %v1051, %v1045
        %v1053 = vadd.f32 %v1052, %v1046
        %v1054 = vadd.f32 %v1053, %v1047
        %v1055 = vadd.f32 %v1054, %v1048
        %1056 = vadd.xlane.f32.xlu0 %v1055
        %v1057 = vpop.xlane.xlu0 %1056
        %v1058 = vrot.slane %v1057, 4
        %v1059 = vadd.f32 %v1057, %v1058
        %v1060 = vrot.slane %v1059, 2
        %v1061 = vadd.f32 %v1059, %v1060
        %v1062 = vrot.slane %v1061, 1
        %v1063 = vadd.f32 %v1061, %v1062
        %s1064 = vtos %v1063
        %s1065 = smul.f32 %s1064, 0.00012207031
        %s1066 = smul.f32 %s1040, %s1040
        %s1067 = ssub.f32 %s1065, %s1066
        %v1068 = vstv %s1040
        %v1069 = vsub.f32 %v1016, %v1068
        %v1070 = vsub.f32 %v1017, %v1068
        %v1071 = vsub.f32 %v1018, %v1068
        %v1072 = vsub.f32 %v1019, %v1068
        %v1073 = vsub.f32 %v1020, %v1068
        %v1074 = vsub.f32 %v1021, %v1068
        %v1075 = vsub.f32 %v1022, %v1068
        %v1076 = vsub.f32 %v1023, %v1068
        %s1077 = sadd.f32 %s1067, 1e-05
        %v1078 = vstv %s1077
        %v1079 = vrsqrt.pop %v1078
        %v1080 = vmul.f32 %v1079, %v1078
        %v1081 = vmul.f32 %v1080, %v1079
        %v1082 = vmul.f32 0.5, %v1081
        %v1083 = vsub.f32 1.5, %v1082
        %v1084 = vmul.f32 %v1079, %v1083
        %vm1085 = vweird.f32 %v1078
        %vm1086 = vweird.f32 %v1079
        %vm1087 = vmor %vm1085, %vm1086
        %v1088 = vsel %vm1087, %v1079, %v1084
        %s1089 = vtos %v1088
        %v1090 = vstv %s1089
        %v1091 = vmul.f32 %v1069, %v1090
        %v1092 = vmul.f32 %v1070, %v1090
        %v1093 = vmul.f32 %v1071, %v1090
        %v1094 = vmul.f32 %v1072, %v1090
        %v1095 = vmul.f32 %v1073, %v1090
        %v1096 = vmul.f32 %v1074, %v1090
        %v1097 = vmul.f32 %v1075, %v1090
        %v1098 = vmul.f32 %v1076, %v1090
        %s1099 = scalar_lea.vmem %s1, 32
        %v1100 = vld [vmem:[%s1099] sm:$0xff]
        %v1101 = vld [vmem:[%s1099 + $0x8] sm:$0xff]
        %v1102 = vld [vmem:[%s1099 + $0x10] sm:$0xff]
        %v1103 = vld [vmem:[%s1099 + $0x18] sm:$0xff]
        %1105 = vset.pattern.permute.xlu0 0
        %1106 = vperm.xlu0 %1105, %v1100
        %v1107 = vpop.permute.xlu0 %1106
        %1110 = vset.pattern.permute.xlu0 0
        %1111 = vperm.xlu0 %1110, %v1101
        %v1112 = vpop.permute.xlu0 %1111
        %1115 = vset.pattern.permute.xlu0 0
        %1116 = vperm.xlu0 %1115, %v1102
        %v1117 = vpop.permute.xlu0 %1116
        %1120 = vset.pattern.permute.xlu0 0
        %1121 = vperm.xlu0 %1120, %v1103
        %v1122 = vpop.permute.xlu0 %1121
        %v1124 = vmul.f32 %v1091, %v1107
        %v1125 = vmul.f32 %v1092, %v1107
        %v1126 = vmul.f32 %v1093, %v1112
        %v1127 = vmul.f32 %v1094, %v1112
        %v1128 = vmul.f32 %v1095, %v1117
        %v1129 = vmul.f32 %v1096, %v1117
        %v1130 = vmul.f32 %v1097, %v1122
        %v1131 = vmul.f32 %v1098, %v1122
        %s1132 = scalar_lea.vmem %s2, 32
        %v1133 = vld [vmem:[%s1132] sm:$0xff]
        %v1134 = vld [vmem:[%s1132 + $0x8] sm:$0xff]
        %v1135 = vld [vmem:[%s1132 + $0x10] sm:$0xff]
        %v1136 = vld [vmem:[%s1132 + $0x18] sm:$0xff]
        %1138 = vset.pattern.permute.xlu0 0
        %1139 = vperm.xlu0 %1138, %v1133
        %v1140 = vpop.permute.xlu0 %1139
        %1143 = vset.pattern.permute.xlu0 0
        %1144 = vperm.xlu0 %1143, %v1134
        %v1145 = vpop.permute.xlu0 %1144
        %1148 = vset.pattern.permute.xlu0 0
        %1149 = vperm.xlu0 %1148, %v1135
        %v1150 = vpop.permute.xlu0 %1149
        %1153 = vset.pattern.permute.xlu0 0
        %1154 = vperm.xlu0 %1153, %v1136
        %v1155 = vpop.permute.xlu0 %1154
        %v1157 = vadd.f32 %v1124, %v1140
        %v1158 = vadd.f32 %v1125, %v1140
        %v1159 = vadd.f32 %v1126, %v1145
        %v1160 = vadd.f32 %v1127, %v1145
        %v1161 = vadd.f32 %v1128, %v1150
        %v1162 = vadd.f32 %v1129, %v1150
        %v1163 = vadd.f32 %v1130, %v1155
        %v1164 = vadd.f32 %v1131, %v1155
        %1165 = vrot.lane.b32.xlu0 %v1157, 1
        %v1166 = vpop.permute.xlu0 %1165
        %1167 = vrot.lane.b32.xlu0 %v1159, 1
        %v1168 = vpop.permute.xlu0 %1167
        %1169 = vrot.lane.b32.xlu0 %v1161, 1
        %v1170 = vpop.permute.xlu0 %1169
        %1171 = vrot.lane.b32.xlu0 %v1163, 1
        %v1172 = vpop.permute.xlu0 %1171
        %1173 = vrot.lane.b32.xlu0 %v1158, 1
        %v1174 = vpop.permute.xlu0 %1173
        %1175 = vrot.lane.b32.xlu0 %v1160, 1
        %v1176 = vpop.permute.xlu0 %1175
        %1177 = vrot.lane.b32.xlu0 %v1162, 1
        %v1178 = vpop.permute.xlu0 %1177
        %1179 = vrot.lane.b32.xlu0 %v1164, 1
        %v1180 = vpop.permute.xlu0 %1179
        %v1181 = vsel %vm551, %v1166, %v1174
        %v1182 = vsel %vm551, %v1168, %v1176
        %v1183 = vsel %vm551, %v1170, %v1178
        %v1184 = vsel %vm551, %v1172, %v1180
        %v1185 = vsel %vm551, %v1174, %v1166
        %v1186 = vsel %vm551, %v1176, %v1168
        %v1187 = vsel %vm551, %v1178, %v1170
        %v1188 = vsel %vm551, %v1180, %v1172
        %v1189 = vsel %vm564, %v1185, 0.0
        %v1190 = vsel %vm565, %v1181, 0.0
        %v1191 = vsel %vm564, %v1186, 0.0
        %v1192 = vsel %vm565, %v1182, 0.0
        %v1193 = vsel %vm564, %v1187, 0.0
        %v1194 = vsel %vm565, %v1183, 0.0
        %v1195 = vsel %vm564, %v1188, 0.0
        %v1196 = vsel %vm565, %v1184, 0.0
        %1197 = vst [vmem:[#allocation2] sm:$0xff] %v1189
        %1198 = vst [vmem:[#allocation2 + $0x8] sm:$0xff] %v1190
        %1199 = vst [vmem:[#allocation2 + $0x10] sm:$0xff] %v1191
        %1200 = vst [vmem:[#allocation2 + $0x18] sm:$0xff] %v1192
        %1201 = vst [vmem:[#allocation2 + $0x20] sm:$0xff] %v1193
        %1202 = vst [vmem:[#allocation2 + $0x28] sm:$0xff] %v1194
        %1203 = vst [vmem:[#allocation2 + $0x30] sm:$0xff] %v1195
        %1204 = vst [vmem:[#allocation2 + $0x38] sm:$0xff] %v1196
        %1205 = vst [vmem:[#allocation2 + $0x40] sm:$0xff] %v1157
        %1206 = vst [vmem:[#allocation2 + $0x48] sm:$0xff] %v1158
        %1207 = vst [vmem:[#allocation2 + $0x50] sm:$0xff] %v1159
        %1208 = vst [vmem:[#allocation2 + $0x58] sm:$0xff] %v1160
        %1209 = vst [vmem:[#allocation2 + $0x60] sm:$0xff] %v1161
        %1210 = vst [vmem:[#allocation2 + $0x68] sm:$0xff] %v1162
        %1211 = vst [vmem:[#allocation2 + $0x70] sm:$0xff] %v1163
        %1212 = vst [vmem:[#allocation2 + $0x78] sm:$0xff] %v1164
        %1213 = vrot.lane.b32.xlu0 %v1157, 127
        %v1214 = vpop.permute.xlu0 %1213
        %1215 = vrot.lane.b32.xlu0 %v1159, 127
        %v1216 = vpop.permute.xlu0 %1215
        %1217 = vrot.lane.b32.xlu0 %v1161, 127
        %v1218 = vpop.permute.xlu0 %1217
        %1219 = vrot.lane.b32.xlu0 %v1163, 127
        %v1220 = vpop.permute.xlu0 %1219
        %1221 = vrot.lane.b32.xlu0 %v1158, 127
        %v1222 = vpop.permute.xlu0 %1221
        %1223 = vrot.lane.b32.xlu0 %v1160, 127
        %v1224 = vpop.permute.xlu0 %1223
        %1225 = vrot.lane.b32.xlu0 %v1162, 127
        %v1226 = vpop.permute.xlu0 %1225
        %1227 = vrot.lane.b32.xlu0 %v1164, 127
        %v1228 = vpop.permute.xlu0 %1227
        %v1229 = vsel %vm606, %v1214, %v1222
        %v1230 = vsel %vm606, %v1216, %v1224
        %v1231 = vsel %vm606, %v1218, %v1226
        %v1232 = vsel %vm606, %v1220, %v1228
        %v1233 = vsel %vm606, %v1222, %v1214
        %v1234 = vsel %vm606, %v1224, %v1216
        %v1235 = vsel %vm606, %v1226, %v1218
        %v1236 = vsel %vm606, %v1228, %v1220
        %v1237 = vsel %vm619, %v1229, 0.0
        %v1238 = vsel %vm620, %v1233, 0.0
        %v1239 = vsel %vm619, %v1230, 0.0
        %v1240 = vsel %vm620, %v1234, 0.0
        %v1241 = vsel %vm619, %v1231, 0.0
        %v1242 = vsel %vm620, %v1235, 0.0
        %v1243 = vsel %vm619, %v1232, 0.0
        %v1244 = vsel %vm620, %v1236, 0.0
        %1245 = vst [vmem:[#allocation2 + $0x80] sm:$0xff] %v1237
        %1246 = vst [vmem:[#allocation2 + $0x88] sm:$0xff] %v1238
        %1247 = vst [vmem:[#allocation2 + $0x90] sm:$0xff] %v1239
        %1248 = vst [vmem:[#allocation2 + $0x98] sm:$0xff] %v1240
        %1249 = vst [vmem:[#allocation2 + $0xa0] sm:$0xff] %v1241
        %1250 = vst [vmem:[#allocation2 + $0xa8] sm:$0xff] %v1242
        %1251 = vst [vmem:[#allocation2 + $0xb0] sm:$0xff] %v1243
        %1252 = vst [vmem:[#allocation2 + $0xb8] sm:$0xff] %v1244
        %s1253 = scalar_lea.vmem %s3, 16
        %v1254 = vld [vmem:[%s1253] sm:$0xff]
        %v1255 = vld [vmem:[%s1253 + $0x8] sm:$0xff]
        %v1256 = vld [vmem:[#allocation2] sm:$0xff]
        %v1257 = vld [vmem:[#allocation2 + $0x8] sm:$0xff]
        %v1258 = vld [vmem:[#allocation2 + $0x10] sm:$0xff]
        %v1259 = vld [vmem:[#allocation2 + $0x18] sm:$0xff]
        %v1260 = vld [vmem:[#allocation2 + $0x20] sm:$0xff]
        %v1261 = vld [vmem:[#allocation2 + $0x28] sm:$0xff]
        %v1262 = vld [vmem:[#allocation2 + $0x30] sm:$0xff]
        %v1263 = vld [vmem:[#allocation2 + $0x38] sm:$0xff]
        %v1264 = vld [vmem:[#allocation2 + $0x40] sm:$0xff]
        %v1265 = vld [vmem:[#allocation2 + $0x48] sm:$0xff]
        %v1266 = vld [vmem:[#allocation2 + $0x50] sm:$0xff]
        %v1267 = vld [vmem:[#allocation2 + $0x58] sm:$0xff]
        %v1268 = vld [vmem:[#allocation2 + $0x60] sm:$0xff]
        %v1269 = vld [vmem:[#allocation2 + $0x68] sm:$0xff]
        %v1270 = vld [vmem:[#allocation2 + $0x70] sm:$0xff]
        %v1271 = vld [vmem:[#allocation2 + $0x78] sm:$0xff]
        %v1272 = vld [vmem:[#allocation2 + $0x80] sm:$0xff]
        %v1273 = vld [vmem:[#allocation2 + $0x88] sm:$0xff]
        %v1274 = vld [vmem:[#allocation2 + $0x90] sm:$0xff]
        %v1275 = vld [vmem:[#allocation2 + $0x98] sm:$0xff]
        %v1276 = vld [vmem:[#allocation2 + $0xa0] sm:$0xff]
        %v1277 = vld [vmem:[#allocation2 + $0xa8] sm:$0xff]
        %v1278 = vld [vmem:[#allocation2 + $0xb0] sm:$0xff]
        %v1279 = vld [vmem:[#allocation2 + $0xb8] sm:$0xff]
        %s1280 = scalar_lea.vmem %s4, 16
        %v1281 = vld [vmem:[%s1280] sm:$0xff]
        %v1282 = vld [vmem:[%s1280 + $0x8] sm:$0xff]
        %1284 = vset.pattern.permute.xlu0 0
        %1285 = vperm.xlu0 %1284, %v1281
        %v1286 = vpop.permute.xlu0 %1285
        %1289 = vset.pattern.permute.xlu0 0
        %1290 = vperm.xlu0 %1289, %v1282
        %v1291 = vpop.permute.xlu0 %1290
        %v1294 = vsel %vm675, %v1254, 0
        %v1297 = vsel %vm675, %v1255, 0
        %1299 = vmatpush.msra.mxu0 0.0
        %1300 = vmatpush.msra.mxu0 0.0
        %1301 = vmatpush.msra.mxu0 0.0
        %1302 = vmatpush.msra.mxu0 0.0
        %1303 = vmatpush.msra.mxu0 %v1278
        %1304 = vmatpush.msra.mxu0 %v1276
        %1305 = vmatpush.msra.mxu0 %v1274
        %1306 = vmatpush.msra.mxu0 %v1272
        %1307 = vmatpush.msra.mxu0 %v1270
        %1308 = vmatpush.msra.mxu0 %v1268
        %1309 = vmatpush.msra.mxu0 %v1266
        %1310 = vmatpush.msra.mxu0 %v1264
        %1311 = vmatpush.msra.mxu0 %v1262
        %1312 = vmatpush.msra.mxu0 %v1260
        %1313 = vmatpush.msra.mxu0 %v1258
        %1314 = vmatpush.msra.mxu0 %v1256
        %1315 = vmatmul.f32.gmra.mxu0 %v1294
        %v1316 = vpop.f32.mrf.mxu0
        %v1317 = vadd.f32 %v1286, %v1316
        %1318 = vmatmul.f32.gmra.mxu0 %v1297
        %v1319 = vpop.f32.mrf.mxu0
        %v1320 = vadd.f32 %v1291, %v1319
        %1321 = vdwg.mxu0
        %1322 = vmatpush.msra.mxu0 0.0
        %1323 = vmatpush.msra.mxu0 0.0
        %1324 = vmatpush.msra.mxu0 0.0
        %1325 = vmatpush.msra.mxu0 0.0
        %1326 = vmatpush.msra.mxu0 %v1279
        %1327 = vmatpush.msra.mxu0 %v1277
        %1328 = vmatpush.msra.mxu0 %v1275
        %1329 = vmatpush.msra.mxu0 %v1273
        %1330 = vmatpush.msra.mxu0 %v1271
        %1331 = vmatpush.msra.mxu0 %v1269
        %1332 = vmatpush.msra.mxu0 %v1267
        %1333 = vmatpush.msra.mxu0 %v1265
        %1334 = vmatpush.msra.mxu0 %v1263
        %1335 = vmatpush.msra.mxu0 %v1261
        %1336 = vmatpush.msra.mxu0 %v1259
        %1337 = vmatpush.msra.mxu0 %v1257
        %1338 = vmatmul.f32.gmra.mxu0 %v1294
        %v1339 = vpop.f32.mrf.mxu0
        %v1340 = vadd.f32 %v1286, %v1339
        %1341 = vmatmul.f32.gmra.mxu0 %v1297
        %v1342 = vpop.f32.mrf.mxu0
        %v1343 = vadd.f32 %v1291, %v1342
        %1344 = vdwg.mxu0
        %v1345 = vxor.u32 %v1320, 2147483648
        %v1346 = vxor.u32 %v1343, 2147483648
        %v1347 = vmul.f32 %v1345, 1.442695
        %v1348 = vpow.pop %v1347
        %v1349 = vmul.f32 %v1346, 1.442695
        %v1350 = vpow.pop %v1349
        %v1351 = vadd.f32 %v1348, 1.0
        %v1352 = vadd.f32 %v1350, 1.0
        %v1353 = vrcp.pop %v1351
        %v1354 = vmul.f32 %v1351, %v1353
        %v1355 = vsub.f32 1.0, %v1354
        %v1356 = vmul.f32 %v1353, %v1355
        %v1357 = vadd.f32 %v1353, %v1356
        %vm1358 = vweird.f32 %v1351
        %vm1359 = vweird.f32 %v1353
        %vm1360 = vmor %vm1358, %vm1359
        %v1361 = vsel %vm1360, %v1353, %v1357
        %v1362 = vand.u32 2147483647, %v1351
        %vm1363 = vcmp.eq.f32.partialorder %v1362, 8.507059e+37
        %v1364 = vand.u32 %v1351, 2147483648
        %v1365 = vor.u32 1.1754944e-38, %v1364
        %v1366 = vsel %vm1363, %v1365, %v1361
        %v1367 = vmul.f32 1.0, %v1366
        %v1368 = vrcp.pop %v1352
        %v1369 = vmul.f32 %v1352, %v1368
        %v1370 = vsub.f32 1.0, %v1369
        %v1371 = vmul.f32 %v1368, %v1370
        %v1372 = vadd.f32 %v1368, %v1371
        %vm1373 = vweird.f32 %v1352
        %vm1374 = vweird.f32 %v1368
        %vm1375 = vmor %vm1373, %vm1374
        %v1376 = vsel %vm1375, %v1368, %v1372
        %v1377 = vand.u32 2147483647, %v1352
        %vm1378 = vcmp.eq.f32.partialorder %v1377, 8.507059e+37
        %v1379 = vand.u32 %v1352, 2147483648
        %v1380 = vor.u32 1.1754944e-38, %v1379
        %v1381 = vsel %vm1378, %v1380, %v1376
        %v1382 = vmul.f32 1.0, %v1381
        %v1383 = vmul.f32 %v1317, %v1367
        %v1384 = vmul.f32 %v1340, %v1382
        %s1385 = scalar_lea.vmem %s5, 8
        %v1386 = vld [vmem:[%s1385] sm:$0xff]
        %1388 = vset.pattern.permute.xlu0 1
        %1389 = vperm.xlu0 %1388, %v1386
        %v1390 = vpop.permute.xlu0 %1389
        %v1392 = vmul.f32 %v1390, %v1383
        %v1393 = vmul.f32 %v1390, %v1384
        %1394 = vrot.lane.b32.xlu0 %v1383, 1
        %v1395 = vpop.permute.xlu0 %1394
        %1396 = vrot.lane.b32.xlu0 %v1384, 1
        %v1397 = vpop.permute.xlu0 %1396
        %v1398 = vsel %vm551, %v1395, %v1397
        %v1399 = vsel %vm551, %v1397, %v1395
        %v1400 = vsel %vm564, %v1399, 0.0
        %v1401 = vsel %vm565, %v1398, 0.0
        %1402 = vset.pattern.permute.xlu0 0
        %1403 = vperm.xlu0 %1402, %v1386
        %v1404 = vpop.permute.xlu0 %1403
        %v1406 = vmul.f32 %v1404, %v1400
        %v1407 = vmul.f32 %v1404, %v1401
        %v1408 = vadd.f32 %v1392, %v1406
        %v1409 = vadd.f32 %v1393, %v1407
        %1410 = vrot.lane.b32.xlu0 %v1383, 127
        %v1411 = vpop.permute.xlu0 %1410
        %1412 = vrot.lane.b32.xlu0 %v1384, 127
        %v1413 = vpop.permute.xlu0 %1412
        %v1414 = vsel %vm606, %v1411, %v1413
        %v1415 = vsel %vm606, %v1413, %v1411
        %v1416 = vsel %vm619, %v1414, 0.0
        %v1417 = vsel %vm620, %v1415, 0.0
        %1418 = vset.pattern.permute.xlu0 2
        %1419 = vperm.xlu0 %1418, %v1386
        %v1420 = vpop.permute.xlu0 %1419
        %v1422 = vmul.f32 %v1420, %v1416
        %v1423 = vmul.f32 %v1420, %v1417
        %v1424 = vadd.f32 %v1408, %v1422
        %v1425 = vadd.f32 %v1409, %v1423
        %s1426 = scalar_lea.vmem %s6, 8
        %v1427 = vld [vmem:[%s1426] sm:$0xff]
        %1429 = vset.pattern.permute.xlu0 0
        %1430 = vperm.xlu0 %1429, %v1427
        %v1431 = vpop.permute.xlu0 %1430
        %v1433 = vadd.f32 %v1424, %v1431
        %v1434 = vadd.f32 %v1425, %v1431
        %v1435 = vadd.f32 %v1433, %v1434
        %1436 = vadd.xlane.f32.xlu0 %v1435
        %v1437 = vpop.xlane.xlu0 %1436
        %v1438 = vrot.slane %v1437, 4
        %v1439 = vadd.f32 %v1437, %v1438
        %v1440 = vrot.slane %v1439, 2
        %v1441 = vadd.f32 %v1439, %v1440
        %v1442 = vrot.slane %v1441, 1
        %v1443 = vadd.f32 %v1441, %v1442
        %s1444 = vtos %v1443
        %s1445 = smul.f32 %s1444, 0.00048828125
        %v1446 = vmul.f32 %v1433, %v1433
        %v1447 = vmul.f32 %v1434, %v1434
        %v1448 = vadd.f32 %v1446, %v1447
        %1449 = vadd.xlane.f32.xlu0 %v1448
        %v1450 = vpop.xlane.xlu0 %1449
        %v1451 = vrot.slane %v1450, 4
        %v1452 = vadd.f32 %v1450, %v1451
        %v1453 = vrot.slane %v1452, 2
        %v1454 = vadd.f32 %v1452, %v1453
        %v1455 = vrot.slane %v1454, 1
        %v1456 = vadd.f32 %v1454, %v1455
        %s1457 = vtos %v1456
        %s1458 = smul.f32 %s1457, 0.00048828125
        %s1459 = smul.f32 %s1445, %s1445
        %s1460 = ssub.f32 %s1458, %s1459
        %v1461 = vstv %s1445
        %v1462 = vsub.f32 %v1433, %v1461
        %v1463 = vsub.f32 %v1434, %v1461
        %s1464 = sadd.f32 %s1460, 1e-05
        %v1465 = vstv %s1464
        %v1466 = vrsqrt.pop %v1465
        %v1467 = vmul.f32 %v1466, %v1465
        %v1468 = vmul.f32 %v1467, %v1466
        %v1469 = vmul.f32 0.5, %v1468
        %v1470 = vsub.f32 1.5, %v1469
        %v1471 = vmul.f32 %v1466, %v1470
        %vm1472 = vweird.f32 %v1465
        %vm1473 = vweird.f32 %v1466
        %vm1474 = vmor %vm1472, %vm1473
        %v1475 = vsel %vm1474, %v1466, %v1471
        %s1476 = vtos %v1475
        %v1477 = vstv %s1476
        %v1478 = vmul.f32 %v1462, %v1477
        %v1479 = vmul.f32 %v1463, %v1477
        %s1480 = scalar_lea.vmem %s7, 8
        %v1481 = vld [vmem:[%s1480] sm:$0xff]
        %1483 = vset.pattern.permute.xlu0 0
        %1484 = vperm.xlu0 %1483, %v1481
        %v1485 = vpop.permute.xlu0 %1484
        %v1487 = vmul.f32 %v1478, %v1485
        %v1488 = vmul.f32 %v1479, %v1485
        %s1489 = scalar_lea.vmem %s8, 8
        %v1490 = vld [vmem:[%s1489] sm:$0xff]
        %1492 = vset.pattern.permute.xlu0 0
        %1493 = vperm.xlu0 %1492, %v1490
        %v1494 = vpop.permute.xlu0 %1493
        %v1496 = vadd.f32 %v1487, %v1494
        %v1497 = vadd.f32 %v1488, %v1494
        %v1498 = vxor.u32 %v1496, 2147483648
        %v1499 = vxor.u32 %v1497, 2147483648
        %v1500 = vmul.f32 %v1498, 1.442695
        %v1501 = vpow.pop %v1500
        %v1502 = vmul.f32 %v1499, 1.442695
        %v1503 = vpow.pop %v1502
        %v1504 = vadd.f32 %v1501, 1.0
        %v1505 = vadd.f32 %v1503, 1.0
        %v1506 = vrcp.pop %v1504
        %v1507 = vmul.f32 %v1504, %v1506
        %v1508 = vsub.f32 1.0, %v1507
        %v1509 = vmul.f32 %v1506, %v1508
        %v1510 = vadd.f32 %v1506, %v1509
        %vm1511 = vweird.f32 %v1504
        %vm1512 = vweird.f32 %v1506
        %vm1513 = vmor %vm1511, %vm1512
        %v1514 = vsel %vm1513, %v1506, %v1510
        %v1515 = vand.u32 2147483647, %v1504
        %vm1516 = vcmp.eq.f32.partialorder %v1515, 8.507059e+37
        %v1517 = vand.u32 %v1504, 2147483648
        %v1518 = vor.u32 1.1754944e-38, %v1517
        %v1519 = vsel %vm1516, %v1518, %v1514
        %v1520 = vmul.f32 1.0, %v1519
        %v1521 = vrcp.pop %v1505
        %v1522 = vmul.f32 %v1505, %v1521
        %v1523 = vsub.f32 1.0, %v1522
        %v1524 = vmul.f32 %v1521, %v1523
        %v1525 = vadd.f32 %v1521, %v1524
        %vm1526 = vweird.f32 %v1505
        %vm1527 = vweird.f32 %v1521
        %vm1528 = vmor %vm1526, %vm1527
        %v1529 = vsel %vm1528, %v1521, %v1525
        %v1530 = vand.u32 2147483647, %v1505
        %vm1531 = vcmp.eq.f32.partialorder %v1530, 8.507059e+37
        %v1532 = vand.u32 %v1505, 2147483648
        %v1533 = vor.u32 1.1754944e-38, %v1532
        %v1534 = vsel %vm1531, %v1533, %v1529
        %v1535 = vmul.f32 1.0, %v1534
        %v1536 = vmul.f32 %v1496, %v1520
        %v1537 = vmul.f32 %v1497, %v1535
        %s1538 = scalar_lea.vmem %s9, 32
        %v1539 = vld [vmem:[%s1538] sm:$0xff]
        %v1540 = vld [vmem:[%s1538 + $0x8] sm:$0xff]
        %v1541 = vld [vmem:[%s1538 + $0x10] sm:$0xff]
        %v1542 = vld [vmem:[%s1538 + $0x18] sm:$0xff]
        %s1543 = scalar_lea.vmem %s10, 32
        %v1544 = vld [vmem:[%s1543] sm:$0xff]
        %v1545 = vld [vmem:[%s1543 + $0x8] sm:$0xff]
        %v1546 = vld [vmem:[%s1543 + $0x10] sm:$0xff]
        %v1547 = vld [vmem:[%s1543 + $0x18] sm:$0xff]
        %1549 = vset.pattern.permute.xlu0 0
        %1550 = vperm.xlu0 %1549, %v1544
        %v1551 = vpop.permute.xlu0 %1550
        %1554 = vset.pattern.permute.xlu0 0
        %1555 = vperm.xlu0 %1554, %v1545
        %v1556 = vpop.permute.xlu0 %1555
        %1559 = vset.pattern.permute.xlu0 0
        %1560 = vperm.xlu0 %1559, %v1546
        %v1561 = vpop.permute.xlu0 %1560
        %1564 = vset.pattern.permute.xlu0 0
        %1565 = vperm.xlu0 %1564, %v1547
        %v1566 = vpop.permute.xlu0 %1565
        %v1569 = vsel %vm945, %v1539, 0
        %v1572 = vsel %vm945, %v1540, 0
        %v1575 = vsel %vm945, %v1541, 0
        %v1578 = vsel %vm945, %v1542, 0
        %1580 = vmatpush.msra.mxu0 0.0
        %1581 = vmatpush.msra.mxu0 0.0
        %1582 = vmatpush.msra.mxu0 0.0
        %1583 = vmatpush.msra.mxu0 0.0
        %1584 = vmatpush.msra.mxu0 0.0
        %1585 = vmatpush.msra.mxu0 0.0
        %1586 = vmatpush.msra.mxu0 0.0
        %1587 = vmatpush.msra.mxu0 0.0
        %1588 = vmatpush.msra.mxu0 0.0
        %1589 = vmatpush.msra.mxu0 0.0
        %1590 = vmatpush.msra.mxu0 0.0
        %1591 = vmatpush.msra.mxu0 0.0
        %1592 = vmatpush.msra.mxu0 0.0
        %1593 = vmatpush.msra.mxu0 0.0
        %1594 = vmatpush.msra.mxu0 0.0
        %1595 = vmatpush.msra.mxu0 %v1536
        %1596 = vmatmul.f32.gmra.mxu0 %v1569
        %v1597 = vpop.f32.mrf.mxu0
        %v1598 = vadd.f32 %v1551, %v1597
        %1599 = vmatmul.f32.gmra.mxu0 %v1572
        %v1600 = vpop.f32.mrf.mxu0
        %v1601 = vadd.f32 %v1556, %v1600
        %1602 = vmatmul.f32.gmra.mxu0 %v1575
        %v1603 = vpop.f32.mrf.mxu0
        %v1604 = vadd.f32 %v1561, %v1603
        %1605 = vmatmul.f32.gmra.mxu0 %v1578
        %v1606 = vpop.f32.mrf.mxu0
        %v1607 = vadd.f32 %v1566, %v1606
        %1608 = vdwg.mxu0
        %1609 = vmatpush.msra.mxu0 0.0
        %1610 = vmatpush.msra.mxu0 0.0
        %1611 = vmatpush.msra.mxu0 0.0
        %1612 = vmatpush.msra.mxu0 0.0
        %1613 = vmatpush.msra.mxu0 0.0
        %1614 = vmatpush.msra.mxu0 0.0
        %1615 = vmatpush.msra.mxu0 0.0
        %1616 = vmatpush.msra.mxu0 0.0
        %1617 = vmatpush.msra.mxu0 0.0
        %1618 = vmatpush.msra.mxu0 0.0
        %1619 = vmatpush.msra.mxu0 0.0
        %1620 = vmatpush.msra.mxu0 0.0
        %1621 = vmatpush.msra.mxu0 0.0
        %1622 = vmatpush.msra.mxu0 0.0
        %1623 = vmatpush.msra.mxu0 0.0
        %1624 = vmatpush.msra.mxu0 %v1537
        %1625 = vmatmul.f32.gmra.mxu0 %v1569
        %v1626 = vpop.f32.mrf.mxu0
        %v1627 = vadd.f32 %v1551, %v1626
        %1628 = vmatmul.f32.gmra.mxu0 %v1572
        %v1629 = vpop.f32.mrf.mxu0
        %v1630 = vadd.f32 %v1556, %v1629
        %1631 = vmatmul.f32.gmra.mxu0 %v1575
        %v1632 = vpop.f32.mrf.mxu0
        %v1633 = vadd.f32 %v1561, %v1632
        %1634 = vmatmul.f32.gmra.mxu0 %v1578
        %v1635 = vpop.f32.mrf.mxu0
        %v1636 = vadd.f32 %v1566, %v1635
        %1637 = vdwg.mxu0
        %v1638 = vadd.f32 %v1016, %v1598
        %v1639 = vadd.f32 %v1017, %v1627
        %v1640 = vadd.f32 %v1018, %v1601
        %v1641 = vadd.f32 %v1019, %v1630
        %v1642 = vadd.f32 %v1020, %v1604
        %v1643 = vadd.f32 %v1021, %v1633
        %v1644 = vadd.f32 %v1022, %v1607
        %v1645 = vadd.f32 %v1023, %v1636
        %1646 = vst [vmem:[%s379] sm:$0xff] %v1638
        %1647 = vst [vmem:[%s379 + $0x8] sm:$0xff] %v1639
        %1648 = vst [vmem:[%s379 + $0x10] sm:$0xff] %v1640
        %1649 = vst [vmem:[%s379 + $0x18] sm:$0xff] %v1641
        %1650 = vst [vmem:[%s379 + $0x20] sm:$0xff] %v1642
        %1651 = vst [vmem:[%s379 + $0x28] sm:$0xff] %v1643
        %1652 = vst [vmem:[%s379 + $0x30] sm:$0xff] %v1644
        %1653 = vst [vmem:[%s379 + $0x38] sm:$0xff] %v1645
        %s1654 = sand.u32 %s269, 1
        %s1655 = scalar_lea.sflag [#allocation4], %s1654
        %s1656 = sand.u32 %s269, 1
        %s1657 = smul.addr %s1656, 64
        %s1658 = scalar_lea.vmem [#allocation3], %s1657
        // Predicated region
        $region65: #{_lambda_.1} parent=63 // pred_check
          %p1659 = pneg %p279
        $region66: #{_lambda_.1} parent=63 // pred_check_branch
          %1661 = sbr.rel (%p1659) target = $region68
        $region67: #{_lambda_.1} parent=63 // pred_region
          %1663 = vsyncadd %s1655, 0
          %s1664 = smul.addr %s25, 8
          %s1665 = smul.addr %s1664, 8
          %s1666 = scalar_lea.hbm %s11, %s1665
          %s1667 = sshll.u32 %s1658, 4
          %s1668 = int_to_ptr.vmem [resolvable:$true] %s1667
          %s1669 = sshll.u32 %s1666, 4
          %s1670 = int_to_ptr.hbm [resolvable:$true] %s1669
          %1675 = dma.vmem_to_hbm [thread:$0]  %s1668, 1024, %s1670, %s1655, 256, 256, 16
        $region68: #{_lambda_.1} parent=63 // pred_fallthru
          _
      $region64: #{_lambda_.1} parent=5 // pred_fallthru
        _
      %p1676 = scmp.le.s32.totalorder 2, %s20
      // Predicated region
      $region69: #{_lambda_.1} parent=5 // pred_check
        %p1677 = pneg %p1676
      $region70: #{_lambda_.1} parent=5 // pred_check_branch
        %1679 = sbr.rel (%p1677) target = $region72
      $region71: #{_lambda_.1} parent=5 // pred_region
        %s1680 = ssub.s32 %s20, 2
        // Predicated region
        $region73: #{_lambda_.1} parent=71 // pred_check
          %p1681 = pneg %p285
        $region74: #{_lambda_.1} parent=71 // pred_check_branch
          %1683 = sbr.rel (%p1681) target = $region76
        $region75: #{_lambda_.1} parent=71 // pred_region
          %s1684 = sand.u32 %s270, 1
          %s1685 = scalar_lea.sflag [#allocation4], %s1684
          %s1686 = sand.u32 %s270, 1
          %s1687 = smul.addr %s1686, 64
          %s1688 = scalar_lea.vmem [#allocation3], %s1687
          %1690 = dma.done %s1685, 1024
        $region76: #{_lambda_.1} parent=71 // pred_fallthru
          _
      $region72: #{_lambda_.1} parent=5 // pred_fallthru
        _
    $region6: #{_lambda_.1} parent=1 // loop_footer
      %s24 = sadd.s32 1, %s20
    $region7: #{_lambda_.1} parent=1 // loop_footer_branch
      %19 = sbr.rel target = $region3
    $region8: #{_lambda_.1} parent=1 // loop_exit
      _
    %1691 = vsyncpa [#allocation4], 1
    %s1692 = scalar_lea.sflag [#allocation4], 1
    %1693 = vsyncpa %s1692, 1

</llo_original>
